<compile_context>
chip_gen: v6e
topology: v6e:2x2x1
jax: 0.10.0
libtpu: 0.0.40
codegen_flags: <defaults>
</compile_context>

<pallas_src>
import functools
import math

import jax
import jax.numpy as jnp
from jax.experimental import pallas as pl
from jax.experimental.pallas import tpu as pltpu

# Make both the Pallas dots and the pure-JAX reference use the most accurate
# f32 matmul path so the tolerance check below is meaningful.
jax.config.update("jax_default_matmul_precision", "highest")


def _round_up(x: int, m: int) -> int:
    return (x + m - 1) // m * m


def _esn_kernel(x0_ref, u_ref, w_cat_ref, b_ref, w_fc_t_ref, b_fc_ref,
                h_ref, xs_ref, ux_ref, *, leak_rate: float, n_pad: int,
                output_size: int):
    """One grid step == one ESN timestep for the whole (padded) batch.

    ux_ref is a persistent VMEM scratch of shape (B_pad, N_pad + H_pad):
    lanes [:n_pad] hold the current input u, lanes [n_pad:] carry the
    reservoir state x across grid iterations.
    """
    t = pl.program_id(0)

    @pl.when(t == 0)
    def _():
        ux_ref[:, n_pad:] = x0_ref[...]          # load initial state once

    ux_ref[:, :n_pad] = u_ref[...]               # this step's input slab

    x = ux_ref[:, n_pad:]                        # (B_pad, H_pad) previous state

    # Fused projection: [u, x] @ [[W_in^T], [W^T]] + b   -> one MXU dot
    pre = jnp.dot(ux_ref[...], w_cat_ref[...],
                  preferred_element_type=jnp.float32) + b_ref[...]

    # Leaky reservoir update (reservoir.evolve)
    x_new = (1.0 - leak_rate) * x + leak_rate * jnp.tanh(pre)
    ux_ref[:, n_pad:] = x_new                    # carry state to next step
    xs_ref[...] = x_new

    # Readout: fc(x_new^T) == x_new @ W_fc^T + b_fc
    logits = jnp.dot(x_new, w_fc_t_ref[...],
                     preferred_element_type=jnp.float32) + b_fc_ref[...]

    if output_size != 1:
        if logits.shape[-1] != output_size:
            # mask padded output lanes so they get zero softmax mass
            lane = jax.lax.broadcasted_iota(jnp.int32, logits.shape, 1)
            logits = jnp.where(lane < output_size, logits, -1e30)
        m = jnp.max(logits, axis=-1, keepdims=True)
        e = jnp.exp(logits - m)
        h_ref[...] = e * pl.reciprocal(jnp.sum(e, axis=-1, keepdims=True),
                                       approx=False)
    else:
        h_ref[...] = logits


def esn_forward_seq(inputs, x0, w_in, w, b, w_fc, b_fc, *, leak_rate):
    """Run the ESN over a (T, B, ...) input sequence in one fused Pallas call.

    Returns (h, xs): h (T, B, O) per-step output probabilities,
    xs (T, B, H) per-step reservoir states (xs[-1] is the final state).
    """
    T, B = inputs.shape[0], inputs.shape[1]
    N = math.prod(inputs.shape[2:])
    H = w.shape[0]
    O = w_fc.shape[0]

    B_pad = _round_up(B, 8)
    N_pad = _round_up(N, 128)
    H_pad = _round_up(H, 128)
    O_pad = _round_up(O, 128)

    f32 = jnp.float32

    # --- one-time glue (padding + pre-transpose + concat), outside the T loop ---
    u_all = jnp.zeros((T, B_pad, N_pad), f32).at[:, :B, :N].set(
        inputs.reshape(T, B, N).astype(f32))
    x0_p = jnp.zeros((B_pad, H_pad), f32).at[:B, :H].set(x0.astype(f32))

    w_cat = (jnp.zeros((N_pad + H_pad, H_pad), f32)
             .at[:N, :H].set(w_in.T.astype(f32))
             .at[N_pad:N_pad + H, :H].set(w.T.astype(f32)))
    b_row = jnp.zeros((1, H_pad), f32).at[0, :H].set(b.astype(f32))
    w_fc_t = jnp.zeros((H_pad, O_pad), f32).at[:H, :O].set(w_fc.T.astype(f32))
    b_fc_row = jnp.zeros((1, O_pad), f32).at[0, :O].set(b_fc.astype(f32))

    kernel = functools.partial(_esn_kernel, leak_rate=float(leak_rate),
                               n_pad=N_pad, output_size=int(O))

    def const(shape):
        # weights / bias / x0 stay VMEM-resident for the whole grid
        return pl.BlockSpec(shape, lambda t: (0,) * len(shape))

    h_pad, xs_pad = pl.pallas_call(
        kernel,
        grid=(T,),
        in_specs=[
            const((B_pad, H_pad)),                                    # x0
            pl.BlockSpec((None, B_pad, N_pad), lambda t: (t, 0, 0)),  # u_all[t]
            const((N_pad + H_pad, H_pad)),                            # W_cat
            const((1, H_pad)),                                        # b
            const((H_pad, O_pad)),                                    # W_fc^T
            const((1, O_pad)),                                        # b_fc
        ],
        out_specs=(
            pl.BlockSpec((None, B_pad, O_pad), lambda t: (t, 0, 0)),  # h[t]
            pl.BlockSpec((None, B_pad, H_pad), lambda t: (t, 0, 0)),  # x[t]
        ),
        out_shape=(
            jax.ShapeDtypeStruct((T, B_pad, O_pad), f32),
            jax.ShapeDtypeStruct((T, B_pad, H_pad), f32),
        ),
        scratch_shapes=[pltpu.VMEM((B_pad, N_pad + H_pad), f32)],
        compiler_params=pltpu.CompilerParams(
            dimension_semantics=("arbitrary",)),   # recurrence is sequential in T
    )(x0_p, u_all, w_cat, b_row, w_fc_t, b_fc_row)

    return h_pad[:, :B, :O], xs_pad[:, :B, :H]


def esn_forward(input_data, x_state, w_in, w, b, w_fc, b_fc, *, leak_rate):
    """Single-step forward matching the PyTorch module: returns (h:(1,O), x_new:(1,H))."""
    H = w.shape[0]
    u = input_data.reshape(1, 1, -1)
    h, xs = esn_forward_seq(u, x_state.reshape(1, H), w_in, w, b, w_fc, b_fc,
                            leak_rate=leak_rate)
    return h[0], xs[0]


def esn_forward_seq_ref(inputs, x0, w_in, w, b, w_fc, b_fc, *, leak_rate):
    """Pure-JAX reference mirroring the PyTorch column-vector math, scanned over T."""
    T, B = inputs.shape[0], inputs.shape[1]
    u_all = inputs.reshape(T, B, -1).astype(jnp.float32)

    def step(x, u):
        pre = u @ w_in.T + x @ w.T + b[None, :]
        x_new = (1.0 - leak_rate) * x + leak_rate * jnp.tanh(pre)
        logits = x_new @ w_fc.T + b_fc[None, :]
        h = jax.nn.softmax(logits, axis=-1) if w_fc.shape[0] != 1 else logits
        return x_new, (h, x_new)

    _, (hs, xs) = jax.lax.scan(step, x0.astype(jnp.float32), u_all)
    return hs, xs


if __name__ == "__main__":
    T, B = 8, 4                      # timesteps, batched sequences
    FEATURE_SHAPE = (4, 16)          # per-step input_data; flatten() -> N = 64
    N = FEATURE_SHAPE[0] * FEATURE_SHAPE[1]
    HIDDEN, OUTPUT = 32, 10
    LEAK, SPECTRAL_RADIUS, SPARSITY = 0.3, 0.9, 0.5

    key = jax.random.PRNGKey(0)
    k_in, k_w, k_mask, k_b, k_fc_w, k_fc_b, k_x, k_u = jax.random.split(key, 8)

    # deterministic synthetic parameters (shapes follow the module's __init__)
    w_in = jax.random.uniform(k_in, (HIDDEN, N), jnp.float32, -1.0, 1.0)
    w_dense = jax.random.uniform(k_w, (HIDDEN, HIDDEN), jnp.float32, -1.0, 1.0)
    mask = (jax.random.uniform(k_mask, (HIDDEN, HIDDEN)) > SPARSITY).astype(jnp.float32)
    w_sparse = w_dense * mask
    eig_max = jnp.max(jnp.abs(jnp.linalg.eigvals(w_sparse)))
    w = (w_sparse * (SPECTRAL_RADIUS / (eig_max + 1e-8))).astype(jnp.float32)
    b = jax.random.uniform(k_b, (HIDDEN,), jnp.float32, -1.0, 1.0)
    bound = 1.0 / jnp.sqrt(HIDDEN)
    w_fc = jax.random.uniform(k_fc_w, (OUTPUT, HIDDEN), jnp.float32, -bound, bound)
    b_fc = jax.random.uniform(k_fc_b, (OUTPUT,), jnp.float32, -bound, bound)

    # non-zero initial reservoir states + example input sequence
    x0 = jax.random.uniform(k_x, (B, HIDDEN), jnp.float32, -0.5, 0.5)
    inputs = jax.random.normal(k_u, (T, B) + FEATURE_SHAPE, jnp.float32)

    fwd = jax.jit(functools.partial(esn_forward_seq, leak_rate=LEAK))
    h, xs = fwd(inputs, x0, w_in, w, b, w_fc, b_fc)
    jax.block_until_ready((h, xs))

    h_ref, xs_ref = esn_forward_seq_ref(inputs, x0, w_in, w, b, w_fc, b_fc,
                                        leak_rate=LEAK)
    assert h.shape == (T, B, OUTPUT) and xs.shape == (T, B, HIDDEN)
    assert jnp.allclose(h, h_ref, atol=1e-4, rtol=1e-4), \
        float(jnp.max(jnp.abs(h - h_ref)))
    assert jnp.allclose(xs, xs_ref, atol=1e-4, rtol=1e-4), \
        float(jnp.max(jnp.abs(xs - xs_ref)))
    assert jnp.allclose(jnp.sum(h, axis=-1), 1.0, atol=1e-5)

    # single-step / single-sample path (the exact PyTorch forward signature)
    h1, x1 = esn_forward(inputs[0, 0], x0[0], w_in, w, b, w_fc, b_fc, leak_rate=LEAK)
    assert h1.shape == (1, OUTPUT) and x1.shape == (1, HIDDEN)
    assert jnp.allclose(h1[0], h_ref[0, 0], atol=1e-4, rtol=1e-4)

    print("KERNEL_OK")
</pallas_src>

<mosaic_0001>
module attributes {stable_mosaic.version = 11 : i64} {
  func.func @_esn_kernel(%arg0: i32, %arg1: memref<8x128xf32, #tpu.memory_space<vmem>>, %arg2: memref<1x8x128xf32, #tpu.memory_space<vmem>>, %arg3: memref<256x128xf32, #tpu.memory_space<vmem>>, %arg4: memref<1x128xf32, #tpu.memory_space<vmem>>, %arg5: memref<128x128xf32, #tpu.memory_space<vmem>>, %arg6: memref<1x128xf32, #tpu.memory_space<vmem>>, %arg7: memref<1x8x128xf32, #tpu.memory_space<vmem>>, %arg8: memref<1x8x128xf32, #tpu.memory_space<vmem>>, %arg9: memref<8x256xf32, #tpu.memory_space<vmem>>) attributes {dimension_semantics = [#tpu.dimension_semantics<arbitrary>], iteration_bounds = array<i64: 8>, scalar_prefetch = 0 : i64, scratch_operands = 1 : i64, tpu.core_type = #tpu.core_type<tc>, window_params = [{pipeline_mode = #tpu.pipeline_mode<synchronous>, transform_indices = @transform_0, window_bounds = array<i64: 8, 128>}, {transform_indices = @transform_1, window_bounds = array<i64: 1, 8, 128>}, {pipeline_mode = #tpu.pipeline_mode<synchronous>, transform_indices = @transform_2, window_bounds = array<i64: 256, 128>}, {pipeline_mode = #tpu.pipeline_mode<synchronous>, transform_indices = @transform_3, window_bounds = array<i64: 1, 128>}, {pipeline_mode = #tpu.pipeline_mode<synchronous>, transform_indices = @transform_4, window_bounds = array<i64: 128, 128>}, {pipeline_mode = #tpu.pipeline_mode<synchronous>, transform_indices = @transform_5, window_bounds = array<i64: 1, 128>}, {transform_indices = @transform_6, window_bounds = array<i64: 1, 8, 128>}, {transform_indices = @transform_7, window_bounds = array<i64: 1, 8, 128>}]} {
    %c0_i32 = arith.constant 0 : i32
    %0 = arith.cmpi eq, %arg0, %c0_i32 : i32
    %1 = arith.extui %0 : i1 to i32
    %c0_i32_0 = arith.constant 0 : i32
    %2 = arith.cmpi ne, %1, %c0_i32_0 : i32
    scf.if %2 {
      %c0_30 = arith.constant 0 : index
      %c0_31 = arith.constant 0 : index
      %46 = vector.load %arg1[%c0_30, %c0_31] : memref<8x128xf32, #tpu.memory_space<vmem>>, vector<8x128xf32>
      %c0_32 = arith.constant 0 : index
      %c128_33 = arith.constant 128 : index
      %47 = vector.load %arg9[%c0_32, %c128_33] : memref<8x256xf32, #tpu.memory_space<vmem>>, vector<8x128xf32>
      tpu.vector_store %arg9[%c0_32, %c128_33], %46 {strides = array<i32>} : memref<8x256xf32, #tpu.memory_space<vmem>>, vector<8x128xf32>,
    } else {
    }
    %c0 = arith.constant 0 : index
    %c0_1 = arith.constant 0 : index
    %c0_2 = arith.constant 0 : index
    %3 = vector.load %arg2[%c0, %c0_1, %c0_2] : memref<1x8x128xf32, #tpu.memory_space<vmem>>, vector<1x8x128xf32>
    %4 = vector.shape_cast %3 : vector<1x8x128xf32> to vector<8x128xf32>
    %c0_3 = arith.constant 0 : index
    %c0_4 = arith.constant 0 : index
    %5 = vector.load %arg9[%c0_3, %c0_4] : memref<8x256xf32, #tpu.memory_space<vmem>>, vector<8x128xf32>
    tpu.vector_store %arg9[%c0_3, %c0_4], %4 {strides = array<i32>} : memref<8x256xf32, #tpu.memory_space<vmem>>, vector<8x128xf32>,
    %c0_5 = arith.constant 0 : index
    %c128 = arith.constant 128 : index
    %6 = vector.load %arg9[%c0_5, %c128] : memref<8x256xf32, #tpu.memory_space<vmem>>, vector<8x128xf32>
    %c0_6 = arith.constant 0 : index
    %c0_7 = arith.constant 0 : index
    %7 = vector.load %arg9[%c0_6, %c0_7] : memref<8x256xf32, #tpu.memory_space<vmem>>, vector<8x256xf32>
    %c0_8 = arith.constant 0 : index
    %c0_9 = arith.constant 0 : index
    %8 = vector.load %arg3[%c0_8, %c0_9] : memref<256x128xf32, #tpu.memory_space<vmem>>, vector<256x128xf32>
    %cst = arith.constant dense<0.000000e+00> : vector<8x128xf32>
    %9 = tpu.matmul %7, %8, %cst {dimension_numbers = #tpu.dot_dimension_numbers<[1], [0], [0], [1], [0, 0, 1, 1], [], []>, precision = #tpu.contract_precision<fp32>} : vector<8x256xf32>, vector<256x128xf32>, vector<8x128xf32> -> vector<8x128xf32>
    %c0_10 = arith.constant 0 : index
    %c0_11 = arith.constant 0 : index
    %10 = vector.load %arg4[%c0_10, %c0_11] : memref<1x128xf32, #tpu.memory_space<vmem>>, vector<1x128xf32>
    %11 = vector.broadcast %10 : vector<1x128xf32> to vector<8x128xf32>
    %12 = arith.addf %9, %11 : vector<8x128xf32>
    %cst_12 = arith.constant 0.699999988 : f32
    %13 = vector.broadcast %cst_12 : f32 to vector<8x128xf32>
    %14 = arith.mulf %13, %6 : vector<8x128xf32>
    %15 = math.tanh %12 : vector<8x128xf32>
    %cst_13 = arith.constant 3.000000e-01 : f32
    %16 = vector.broadcast %cst_13 : f32 to vector<8x128xf32>
    %17 = arith.mulf %16, %15 : vector<8x128xf32>
    %18 = arith.addf %14, %17 : vector<8x128xf32>
    %c0_14 = arith.constant 0 : index
    %c128_15 = arith.constant 128 : index
    %19 = vector.load %arg9[%c0_14, %c128_15] : memref<8x256xf32, #tpu.memory_space<vmem>>, vector<8x128xf32>
    tpu.vector_store %arg9[%c0_14, %c128_15], %18 {strides = array<i32>} : memref<8x256xf32, #tpu.memory_space<vmem>>, vector<8x128xf32>,
    %c0_16 = arith.constant 0 : index
    %c0_17 = arith.constant 0 : index
    %c0_18 = arith.constant 0 : index
    %20 = vector.load %arg8[%c0_16, %c0_17, %c0_18] : memref<1x8x128xf32, #tpu.memory_space<vmem>>, vector<1x8x128xf32>
    %21 = vector.shape_cast %20 : vector<1x8x128xf32> to vector<8x128xf32>
    %22 = vector.shape_cast %18 : vector<8x128xf32> to vector<1x8x128xf32>
    tpu.vector_store %arg8[%c0_16, %c0_17, %c0_18], %22 {strides = array<i32>} : memref<1x8x128xf32, #tpu.memory_space<vmem>>, vector<1x8x128xf32>,
    %c0_19 = arith.constant 0 : index
    %c0_20 = arith.constant 0 : index
    %23 = vector.load %arg5[%c0_19, %c0_20] : memref<128x128xf32, #tpu.memory_space<vmem>>, vector<128x128xf32>
    %cst_21 = arith.constant dense<0.000000e+00> : vector<8x128xf32>
    %24 = tpu.matmul %18, %23, %cst_21 {dimension_numbers = #tpu.dot_dimension_numbers<[1], [0], [0], [1], [0, 0, 1, 1], [], []>, precision = #tpu.contract_precision<fp32>} : vector<8x128xf32>, vector<128x128xf32>, vector<8x128xf32> -> vector<8x128xf32>
    %c0_22 = arith.constant 0 : index
    %c0_23 = arith.constant 0 : index
    %25 = vector.load %arg6[%c0_22, %c0_23] : memref<1x128xf32, #tpu.memory_space<vmem>>, vector<1x128xf32>
    %26 = vector.broadcast %25 : vector<1x128xf32> to vector<8x128xf32>
    %27 = arith.addf %24, %26 : vector<8x128xf32>
    %28 = tpu.iota {dimensions = array<i32: 1>} : vector<8x128xi32>
    %c10_i32 = arith.constant 10 : i32
    %29 = vector.broadcast %c10_i32 : i32 to vector<8x128xi32>
    %30 = arith.cmpi slt, %28, %29 : vector<8x128xi32>
    %cst_24 = arith.constant -1.000000e+30 : f32
    %31 = vector.broadcast %cst_24 : f32 to vector<8x128xf32>
    %32 = arith.select %30, %27, %31 : vector<8x128xi1>, vector<8x128xf32>
    %cst_25 = arith.constant dense<0xFF800000> : vector<8xf32>
    %33 = vector.multi_reduction <maximumf>, %32, %cst_25 [1] : vector<8x128xf32> to vector<8xf32>
    %34 = vector.shape_cast %33 : vector<8xf32> to vector<8x1xf32>
    %35 = vector.broadcast %34 : vector<8x1xf32> to vector<8x128xf32>
    %36 = arith.subf %32, %35 : vector<8x128xf32>
    %37 = math.exp %36 : vector<8x128xf32>
    %cst_26 = arith.constant dense<0.000000e+00> : vector<8xf32>
    %38 = vector.multi_reduction <add>, %37, %cst_26 [1] : vector<8x128xf32> to vector<8xf32>
    %39 = vector.shape_cast %38 : vector<8xf32> to vector<8x1xf32>
    %40 = tpu.reciprocal %39 : vector<8x1xf32> -> vector<8x1xf32>
    %41 = vector.broadcast %40 : vector<8x1xf32> to vector<8x128xf32>
    %42 = arith.mulf %37, %41 : vector<8x128xf32>
    %c0_27 = arith.constant 0 : index
    %c0_28 = arith.constant 0 : index
    %c0_29 = arith.constant 0 : index
    %43 = vector.load %arg7[%c0_27, %c0_28, %c0_29] : memref<1x8x128xf32, #tpu.memory_space<vmem>>, vector<1x8x128xf32>
    %44 = vector.shape_cast %43 : vector<1x8x128xf32> to vector<8x128xf32>
    %45 = vector.shape_cast %42 : vector<8x128xf32> to vector<1x8x128xf32>
    tpu.vector_store %arg7[%c0_27, %c0_28, %c0_29], %45 {strides = array<i32>} : memref<1x8x128xf32, #tpu.memory_space<vmem>>, vector<1x8x128xf32>,
    return
  }
  func.func @transform_0(%arg0: i32) -> (i32, i32) {
    %c0_i32 = arith.constant 0 : i32
    %c0_i32_0 = arith.constant 0 : i32
    %c0_i32_1 = arith.constant 0 : i32
    return %c0_i32, %c0_i32_0 : i32, i32
  }
  func.func @transform_1(%arg0: i32) -> (i32, i32, i32) {
    %c0_i32 = arith.constant 0 : i32
    %c0_i32_0 = arith.constant 0 : i32
    %c0_i32_1 = arith.constant 0 : i32
    return %arg0, %c0_i32, %c0_i32_0 : i32, i32, i32
  }
  func.func @transform_2(%arg0: i32) -> (i32, i32) {
    %c0_i32 = arith.constant 0 : i32
    %c0_i32_0 = arith.constant 0 : i32
    %c0_i32_1 = arith.constant 0 : i32
    return %c0_i32, %c0_i32_0 : i32, i32
  }
  func.func @transform_3(%arg0: i32) -> (i32, i32) {
    %c0_i32 = arith.constant 0 : i32
    %c0_i32_0 = arith.constant 0 : i32
    %c0_i32_1 = arith.constant 0 : i32
    return %c0_i32, %c0_i32_0 : i32, i32
  }
  func.func @transform_4(%arg0: i32) -> (i32, i32) {
    %c0_i32 = arith.constant 0 : i32
    %c0_i32_0 = arith.constant 0 : i32
    %c0_i32_1 = arith.constant 0 : i32
    return %c0_i32, %c0_i32_0 : i32, i32
  }
  func.func @transform_5(%arg0: i32) -> (i32, i32) {
    %c0_i32 = arith.constant 0 : i32
    %c0_i32_0 = arith.constant 0 : i32
    %c0_i32_1 = arith.constant 0 : i32
    return %c0_i32, %c0_i32_0 : i32, i32
  }
  func.func @transform_6(%arg0: i32) -> (i32, i32, i32) {
    %c0_i32 = arith.constant 0 : i32
    %c0_i32_0 = arith.constant 0 : i32
    %c0_i32_1 = arith.constant 0 : i32
    return %arg0, %c0_i32, %c0_i32_0 : i32, i32, i32
  }
  func.func @transform_7(%arg0: i32) -> (i32, i32, i32) {
    %c0_i32 = arith.constant 0 : i32
    %c0_i32_0 = arith.constant 0 : i32
    %c0_i32_1 = arith.constant 0 : i32
    return %arg0, %c0_i32, %c0_i32_0 : i32, i32, i32
  }
}

</mosaic_0001>

<llo_original>
// kernel: esn_forward_seq.1
$region0: #{esn_forward_seq.1}
  #allocation0 [shape = 'u32[]', space=smem, size = 0x4, offset = 0x4, fixed_abs, tag = 'smem constant byte address 0x4 - core index']
  #allocation1 [shape = 'u32[144,128]{1,0:T(1,128)}', space=vmem, size = 0x12000, scoped, tag = 'internal scratch']
  #allocation2 [shape = 'f32[8,256]{1,0:T(8,128)}', space=vmem, size = 0x2000, scoped, tag = 'scratch operand']
  %s0 = inlined_call_operand.vmem [shape: f32[8,128], index: 0, kind: input, shape index: {}]
  %s1 = inlined_call_operand.vmem [shape: f32[8,8,128], index: 1, kind: input, shape index: {}]
  %s2 = inlined_call_operand.vmem [shape: f32[256,128], index: 2, kind: input, shape index: {}]
  %s3 = inlined_call_operand.vmem [shape: f32[1,128], index: 3, kind: input, shape index: {}]
  %s4 = inlined_call_operand.vmem [shape: f32[128,128], index: 4, kind: input, shape index: {}]
  %s5 = inlined_call_operand.vmem [shape: f32[1,128], index: 5, kind: input, shape index: {}]
  %s6 = inlined_call_operand.vmem [shape: f32[8,8,128], index: 6, kind: output, shape index: {0}]
  %s7 = inlined_call_operand.vmem [shape: f32[8,8,128], index: 7, kind: output, shape index: {1}]
  %8 = xla_tuple %s6, %s7
  %s9 = sld [smem:[#allocation0]]
  $region69: #{esn_forward_seq.1} parent=0
    _
  %s11 = ssub.s32 1, %s9
  %s12 = scalar_select 0, %s11, %s9
  loop: start=0, step=1, limit=10
  $region2: #{esn_forward_seq.1} parent=0 // loop_pre_header
    _
  $region3: #{esn_forward_seq.1} parent=0 // loop_header
    %s14 = sphi 0, %s18
    %p15 = scmp.ge.s32.totalorder %s14, 10
    %s22 = sphi 0, %s22
    %s24 = sphi 0, %s22
    %s25 = sphi 0, %s24
    %s39 = sphi 0, %s25
    %s45 = sphi 0, %s47
    %s48 = sphi 0, %s45
    %s49 = sphi 0, %s48
    %s65 = sphi 0, %s49
    %s69 = sphi 0, %s69
    %s71 = sphi 0, %s69
    %s72 = sphi 0, %s71
    %s86 = sphi 0, %s72
    %s90 = sphi 0, %s90
    %s92 = sphi 0, %s90
    %s93 = sphi 0, %s92
    %s107 = sphi 0, %s93
    %s111 = sphi 0, %s111
    %s113 = sphi 0, %s111
    %s114 = sphi 0, %s113
    %s128 = sphi 0, %s114
    %s132 = sphi 0, %s132
    %s134 = sphi 0, %s132
    %s135 = sphi 0, %s134
    %s149 = sphi 0, %s135
    %s155 = sphi 0, %s157
    %s158 = sphi 0, %s155
    %s159 = sphi 0, %s158
    %s175 = sphi 0, %s159
    %s181 = sphi 0, %s183
    %s184 = sphi 0, %s181
    %s185 = sphi 0, %s184
    %s201 = sphi 0, %s185
  $region4: #{esn_forward_seq.1} parent=0 // loop_header_branch
    %17 = sbr.rel (%p15) target = $region8
  $region5: #{esn_forward_seq.1} parent=0 // loop_body
    %s19 = ssub.s32 %s14, 1
    %s20 = ssub.s32 %s14, 2
    %s21 = sadd.s32 %s14, 1
    %s23 = sadd.s32 %s22, 1
    %p26 = scmp.eq.s32.totalorder %s14, 7
    %p27 = scmp.ne.s32.totalorder %s22, %s24
    %p28 = scmp.eq.s32.totalorder %s14, 0
    %p29 = por %p27, %p28
    %p30 = scmp.ne.s32.totalorder %s22, %s24
    %p31 = scmp.eq.s32.totalorder %s19, 7
    %p32 = por %p30, %p31
    %p33 = scmp.ne.s32.totalorder %s24, %s25
    %p34 = scmp.eq.s32.totalorder %s19, 0
    %p35 = por %p33, %p34
    %p36 = scmp.ne.s32.totalorder %s24, %s25
    %p37 = scmp.eq.s32.totalorder %s20, 7
    %p38 = por %p36, %p37
    %p40 = scmp.ne.s32.totalorder %s25, %s39
    %p41 = scmp.eq.s32.totalorder %s20, 0
    %p42 = por %p40, %p41
    %s43 = ssub.s32 %s14, %s21
    %p44 = scmp.eq.s32.totalorder %s43, 0
    %s46 = sadd.s32 %s45, 1
    %s47 = scalar_select %p44, %s45, %s46
    %p50 = pneg %p44
    %p51 = scmp.eq.s32.totalorder %s14, 7
    %p52 = por %p50, %p51
    %p53 = scmp.ne.s32.totalorder %s45, %s48
    %p54 = scmp.eq.s32.totalorder %s14, 0
    %p55 = por %p53, %p54
    %p56 = scmp.ne.s32.totalorder %s45, %s48
    %p57 = scmp.eq.s32.totalorder %s19, 7
    %p58 = por %p56, %p57
    %p59 = scmp.ne.s32.totalorder %s48, %s49
    %p60 = scmp.eq.s32.totalorder %s19, 0
    %p61 = por %p59, %p60
    %p62 = scmp.ne.s32.totalorder %s48, %s49
    %p63 = scmp.eq.s32.totalorder %s20, 7
    %p64 = por %p62, %p63
    %p66 = scmp.ne.s32.totalorder %s49, %s65
    %p67 = scmp.eq.s32.totalorder %s20, 0
    %p68 = por %p66, %p67
    %s70 = sadd.s32 %s69, 1
    %p73 = scmp.eq.s32.totalorder %s14, 7
    %p74 = scmp.ne.s32.totalorder %s69, %s71
    %p75 = scmp.eq.s32.totalorder %s14, 0
    %p76 = por %p74, %p75
    %p77 = scmp.ne.s32.totalorder %s69, %s71
    %p78 = scmp.eq.s32.totalorder %s19, 7
    %p79 = por %p77, %p78
    %p80 = scmp.ne.s32.totalorder %s71, %s72
    %p81 = scmp.eq.s32.totalorder %s19, 0
    %p82 = por %p80, %p81
    %p83 = scmp.ne.s32.totalorder %s71, %s72
    %p84 = scmp.eq.s32.totalorder %s20, 7
    %p85 = por %p83, %p84
    %p87 = scmp.ne.s32.totalorder %s72, %s86
    %p88 = scmp.eq.s32.totalorder %s20, 0
    %p89 = por %p87, %p88
    %s91 = sadd.s32 %s90, 1
    %p94 = scmp.eq.s32.totalorder %s14, 7
    %p95 = scmp.ne.s32.totalorder %s90, %s92
    %p96 = scmp.eq.s32.totalorder %s14, 0
    %p97 = por %p95, %p96
    %p98 = scmp.ne.s32.totalorder %s90, %s92
    %p99 = scmp.eq.s32.totalorder %s19, 7
    %p100 = por %p98, %p99
    %p101 = scmp.ne.s32.totalorder %s92, %s93
    %p102 = scmp.eq.s32.totalorder %s19, 0
    %p103 = por %p101, %p102
    %p104 = scmp.ne.s32.totalorder %s92, %s93
    %p105 = scmp.eq.s32.totalorder %s20, 7
    %p106 = por %p104, %p105
    %p108 = scmp.ne.s32.totalorder %s93, %s107
    %p109 = scmp.eq.s32.totalorder %s20, 0
    %p110 = por %p108, %p109
    %s112 = sadd.s32 %s111, 1
    %p115 = scmp.eq.s32.totalorder %s14, 7
    %p116 = scmp.ne.s32.totalorder %s111, %s113
    %p117 = scmp.eq.s32.totalorder %s14, 0
    %p118 = por %p116, %p117
    %p119 = scmp.ne.s32.totalorder %s111, %s113
    %p120 = scmp.eq.s32.totalorder %s19, 7
    %p121 = por %p119, %p120
    %p122 = scmp.ne.s32.totalorder %s113, %s114
    %p123 = scmp.eq.s32.totalorder %s19, 0
    %p124 = por %p122, %p123
    %p125 = scmp.ne.s32.totalorder %s113, %s114
    %p126 = scmp.eq.s32.totalorder %s20, 7
    %p127 = por %p125, %p126
    %p129 = scmp.ne.s32.totalorder %s114, %s128
    %p130 = scmp.eq.s32.totalorder %s20, 0
    %p131 = por %p129, %p130
    %s133 = sadd.s32 %s132, 1
    %p136 = scmp.eq.s32.totalorder %s14, 7
    %p137 = scmp.ne.s32.totalorder %s132, %s134
    %p138 = scmp.eq.s32.totalorder %s14, 0
    %p139 = por %p137, %p138
    %p140 = scmp.ne.s32.totalorder %s132, %s134
    %p141 = scmp.eq.s32.totalorder %s19, 7
    %p142 = por %p140, %p141
    %p143 = scmp.ne.s32.totalorder %s134, %s135
    %p144 = scmp.eq.s32.totalorder %s19, 0
    %p145 = por %p143, %p144
    %p146 = scmp.ne.s32.totalorder %s134, %s135
    %p147 = scmp.eq.s32.totalorder %s20, 7
    %p148 = por %p146, %p147
    %p150 = scmp.ne.s32.totalorder %s135, %s149
    %p151 = scmp.eq.s32.totalorder %s20, 0
    %p152 = por %p150, %p151
    %s153 = ssub.s32 %s14, %s21
    %p154 = scmp.eq.s32.totalorder %s153, 0
    %s156 = sadd.s32 %s155, 1
    %s157 = scalar_select %p154, %s155, %s156
    %p160 = pneg %p154
    %p161 = scmp.eq.s32.totalorder %s14, 7
    %p162 = por %p160, %p161
    %p163 = scmp.ne.s32.totalorder %s155, %s158
    %p164 = scmp.eq.s32.totalorder %s14, 0
    %p165 = por %p163, %p164
    %p166 = scmp.ne.s32.totalorder %s155, %s158
    %p167 = scmp.eq.s32.totalorder %s19, 7
    %p168 = por %p166, %p167
    %p169 = scmp.ne.s32.totalorder %s158, %s159
    %p170 = scmp.eq.s32.totalorder %s19, 0
    %p171 = por %p169, %p170
    %p172 = scmp.ne.s32.totalorder %s158, %s159
    %p173 = scmp.eq.s32.totalorder %s20, 7
    %p174 = por %p172, %p173
    %p176 = scmp.ne.s32.totalorder %s159, %s175
    %p177 = scmp.eq.s32.totalorder %s20, 0
    %p178 = por %p176, %p177
    %s179 = ssub.s32 %s14, %s21
    %p180 = scmp.eq.s32.totalorder %s179, 0
    %s182 = sadd.s32 %s181, 1
    %s183 = scalar_select %p180, %s181, %s182
    %p186 = pneg %p180
    %p187 = scmp.eq.s32.totalorder %s14, 7
    %p188 = por %p186, %p187
    %p189 = scmp.ne.s32.totalorder %s181, %s184
    %p190 = scmp.eq.s32.totalorder %s14, 0
    %p191 = por %p189, %p190
    %p192 = scmp.ne.s32.totalorder %s181, %s184
    %p193 = scmp.eq.s32.totalorder %s19, 7
    %p194 = por %p192, %p193
    %p195 = scmp.ne.s32.totalorder %s184, %s185
    %p196 = scmp.eq.s32.totalorder %s19, 0
    %p197 = por %p195, %p196
    %p198 = scmp.ne.s32.totalorder %s184, %s185
    %p199 = scmp.eq.s32.totalorder %s20, 7
    %p200 = por %p198, %p199
    %p202 = scmp.ne.s32.totalorder %s185, %s201
    %p203 = scmp.eq.s32.totalorder %s20, 0
    %p204 = por %p202, %p203
    %p205 = scmp.le.s32.totalorder 1, %s14
    %p206 = scmp.lt.s32.totalorder %s14, 9
    %p207 = pnand %p205, %p206
    %p208 = pneg %p207
    // Predicated region
    $region9: #{esn_forward_seq.1} parent=5 // pred_check
      _
    $region10: #{esn_forward_seq.1} parent=5 // pred_check_branch
      %210 = sbr.rel (%p207) target = $region12
    $region11: #{esn_forward_seq.1} parent=5 // pred_region
      %s211 = ssub.s32 %s14, 1
      // Predicated region
      $region13: #{esn_forward_seq.1} parent=11 // pred_check
        %p212 = pneg %p35
      $region14: #{esn_forward_seq.1} parent=11 // pred_check_branch
        %214 = sbr.rel (%p212) target = $region16
      $region15: #{esn_forward_seq.1} parent=11 // pred_region
        _
      $region16: #{esn_forward_seq.1} parent=11 // pred_fallthru
        _
      // Predicated region
      $region17: #{esn_forward_seq.1} parent=11 // pred_check
        %p215 = pneg %p82
      $region18: #{esn_forward_seq.1} parent=11 // pred_check_branch
        %217 = sbr.rel (%p215) target = $region20
      $region19: #{esn_forward_seq.1} parent=11 // pred_region
        _
      $region20: #{esn_forward_seq.1} parent=11 // pred_fallthru
        _
      // Predicated region
      $region21: #{esn_forward_seq.1} parent=11 // pred_check
        %p218 = pneg %p103
      $region22: #{esn_forward_seq.1} parent=11 // pred_check_branch
        %220 = sbr.rel (%p218) target = $region24
      $region23: #{esn_forward_seq.1} parent=11 // pred_region
        _
      $region24: #{esn_forward_seq.1} parent=11 // pred_fallthru
        _
      // Predicated region
      $region25: #{esn_forward_seq.1} parent=11 // pred_check
        %p221 = pneg %p124
      $region26: #{esn_forward_seq.1} parent=11 // pred_check_branch
        %223 = sbr.rel (%p221) target = $region28
      $region27: #{esn_forward_seq.1} parent=11 // pred_region
        _
      $region28: #{esn_forward_seq.1} parent=11 // pred_fallthru
        _
      // Predicated region
      $region29: #{esn_forward_seq.1} parent=11 // pred_check
        %p224 = pneg %p145
      $region30: #{esn_forward_seq.1} parent=11 // pred_check_branch
        %226 = sbr.rel (%p224) target = $region32
      $region31: #{esn_forward_seq.1} parent=11 // pred_region
        _
      $region32: #{esn_forward_seq.1} parent=11 // pred_fallthru
        _
    $region12: #{esn_forward_seq.1} parent=5 // pred_fallthru
      _
    %p227 = scmp.lt.s32.totalorder %s14, 8
    // Predicated region
    $region33: #{esn_forward_seq.1} parent=5 // pred_check
      %p228 = pneg %p227
    $region34: #{esn_forward_seq.1} parent=5 // pred_check_branch
      %230 = sbr.rel (%p228) target = $region36
    $region35: #{esn_forward_seq.1} parent=5 // pred_region
      // Predicated region
      $region37: #{esn_forward_seq.1} parent=35 // pred_check
        %p231 = pneg %p55
      $region38: #{esn_forward_seq.1} parent=35 // pred_check_branch
        %233 = sbr.rel (%p231) target = $region40
      $region39: #{esn_forward_seq.1} parent=35 // pred_region
        %p234 = scmp.lt.s32.totalorder %s14, 7
        %s235 = scalar_select %p234, %s14, 7
        %s236 = smul.addr %s235, 8
        %s237 = scalar_lea.vmem %s1, %s236
      $region40: #{esn_forward_seq.1} parent=35 // pred_fallthru
        _
    $region36: #{esn_forward_seq.1} parent=5 // pred_fallthru
      _
    %p238 = scmp.le.s32.totalorder 1, %s14
    %p239 = scmp.lt.s32.totalorder %s14, 9
    %p240 = pnand %p238, %p239
    %p241 = pneg %p240
    // Predicated region
    $region41: #{esn_forward_seq.1} parent=5 // pred_check
      _
    $region42: #{esn_forward_seq.1} parent=5 // pred_check_branch
      %243 = sbr.rel (%p240) target = $region44
    $region43: #{esn_forward_seq.1} parent=5 // pred_region
      %s244 = ssub.s32 %s14, 1
      %p245 = pneg %p35
      %p246 = pneg %p32
      %p247 = scmp.lt.s32.totalorder %s19, 7
      %s248 = scalar_select %p247, %s19, 7
      %s249 = smul.addr %s248, 8
      %s250 = scalar_lea.vmem %s1, %s249
      %p251 = pneg %p61
      %p252 = pneg %p58
      %p253 = pneg %p82
      %p254 = pneg %p79
      %p255 = pneg %p103
      %p256 = pneg %p100
      %p257 = pneg %p124
      %p258 = pneg %p121
      %p259 = pneg %p145
      %p260 = pneg %p142
      %p261 = pneg %p171
      %p262 = pneg %p168
      %p263 = scmp.lt.s32.totalorder %s19, 7
      %s264 = scalar_select %p263, %s19, 7
      %s265 = smul.addr %s264, 8
      %s266 = scalar_lea.vmem %s6, %s265
      %p267 = pneg %p197
      %p268 = pneg %p194
      %p269 = scmp.lt.s32.totalorder %s19, 7
      %s270 = scalar_select %p269, %s19, 7
      %s271 = smul.addr %s270, 8
      %s272 = scalar_lea.vmem %s7, %s271
      %p273 = scmp.lt.s32.totalorder %s19, 7
      %s274 = scalar_select %p273, %s19, 7
      %s275 = smul.addr %s274, 8
      %s276 = scalar_lea.vmem %s1, %s275
      %p277 = scmp.lt.s32.totalorder %s19, 7
      %s278 = scalar_select %p277, %s19, 7
      %s279 = smul.addr %s278, 8
      %s280 = scalar_lea.vmem %s6, %s279
      %p281 = scmp.lt.s32.totalorder %s19, 7
      %s282 = scalar_select %p281, %s19, 7
      %s283 = smul.addr %s282, 8
      %s284 = scalar_lea.vmem %s7, %s283
      %p285 = scmp.eq.s32.totalorder %s19, 0
      // Predicated region
      $region45: #{esn_forward_seq.1} parent=43 // pred_check
        %p286 = pneg %p285
      $region46: #{esn_forward_seq.1} parent=43 // pred_check_branch
        %288 = sbr.rel (%p286) target = $region48
      $region47: #{esn_forward_seq.1} parent=43 // pred_region
        %v289 = vld [vmem:[%s0] sm:$0xff]
        %290 = vst [vmem:[#allocation2 + $0x8] sm:$0xff] %v289
      $region48: #{esn_forward_seq.1} parent=43 // pred_fallthru
        _
      %v291 = vld [vmem:[%s276] sm:$0xff]
      %292 = vst [vmem:[#allocation2] sm:$0xff] %v291
      %v293 = vld [vmem:[#allocation2 + $0x8] sm:$0xff]
      %v294 = vld [vmem:[#allocation2] sm:$0xff]
      %v295 = vld [vmem:[%s2] sm:$0xff]
      %v296 = vld [vmem:[%s2 + $0x8] sm:$0xff]
      %v297 = vld [vmem:[%s2 + $0x10] sm:$0xff]
      %v298 = vld [vmem:[%s2 + $0x18] sm:$0xff]
      %v299 = vld [vmem:[%s2 + $0x20] sm:$0xff]
      %v300 = vld [vmem:[%s2 + $0x28] sm:$0xff]
      %v301 = vld [vmem:[%s2 + $0x30] sm:$0xff]
      %v302 = vld [vmem:[%s2 + $0x38] sm:$0xff]
      %v303 = vld [vmem:[%s2 + $0x40] sm:$0xff]
      %v304 = vld [vmem:[%s2 + $0x48] sm:$0xff]
      %v305 = vld [vmem:[%s2 + $0x50] sm:$0xff]
      %v306 = vld [vmem:[%s2 + $0x58] sm:$0xff]
      %v307 = vld [vmem:[%s2 + $0x60] sm:$0xff]
      %v308 = vld [vmem:[%s2 + $0x68] sm:$0xff]
      %v309 = vld [vmem:[%s2 + $0x70] sm:$0xff]
      %v310 = vld [vmem:[%s2 + $0x78] sm:$0xff]
      %v311 = vld [vmem:[%s2 + $0x80] sm:$0xff]
      %v312 = vld [vmem:[%s2 + $0x88] sm:$0xff]
      %v313 = vld [vmem:[%s2 + $0x90] sm:$0xff]
      %v314 = vld [vmem:[%s2 + $0x98] sm:$0xff]
      %v315 = vld [vmem:[%s2 + $0xa0] sm:$0xff]
      %v316 = vld [vmem:[%s2 + $0xa8] sm:$0xff]
      %v317 = vld [vmem:[%s2 + $0xb0] sm:$0xff]
      %v318 = vld [vmem:[%s2 + $0xb8] sm:$0xff]
      %v319 = vld [vmem:[%s2 + $0xc0] sm:$0xff]
      %v320 = vld [vmem:[%s2 + $0xc8] sm:$0xff]
      %v321 = vld [vmem:[%s2 + $0xd0] sm:$0xff]
      %v322 = vld [vmem:[%s2 + $0xd8] sm:$0xff]
      %v323 = vld [vmem:[%s2 + $0xe0] sm:$0xff]
      %v324 = vld [vmem:[%s2 + $0xe8] sm:$0xff]
      %v325 = vld [vmem:[%s2 + $0xf0] sm:$0xff]
      %v326 = vld [vmem:[%s2 + $0xf8] sm:$0xff]
      %v327 = vld [vmem:[%s3] sm:$0x1]
      %v329 = vlaneseq
      %v330 = vshrl.u32 %v329, 7
      %v331 = vsub.s32 0, %v330
      %v332 = vrot.slane %v327, %v331
      %334 = vmatprep.subr.mxu0 0.0
      %v335 = vand.u32 %v310, 4294901760
      %336 = vmatpush1.msra.mxu0 %v335
      %337 = vmatprep.subr.mxu0 0.0
      %v338 = vand.u32 %v309, 4294901760
      %339 = vmatpush1.msra.mxu0 %v338
      %340 = vmatprep.subr.mxu0 0.0
      %v341 = vand.u32 %v308, 4294901760
      %342 = vmatpush1.msra.mxu0 %v341
      %343 = vmatprep.subr.mxu0 0.0
      %v344 = vand.u32 %v307, 4294901760
      %345 = vmatpush1.msra.mxu0 %v344
      %346 = vmatprep.subr.mxu0 0.0
      %v347 = vand.u32 %v306, 4294901760
      %348 = vmatpush1.msra.mxu0 %v347
      %349 = vmatprep.subr.mxu0 0.0
      %v350 = vand.u32 %v305, 4294901760
      %351 = vmatpush1.msra.mxu0 %v350
      %352 = vmatprep.subr.mxu0 0.0
      %v353 = vand.u32 %v304, 4294901760
      %354 = vmatpush1.msra.mxu0 %v353
      %355 = vmatprep.subr.mxu0 0.0
      %v356 = vand.u32 %v303, 4294901760
      %357 = vmatpush1.msra.mxu0 %v356
      %358 = vmatprep.subr.mxu0 0.0
      %v359 = vand.u32 %v302, 4294901760
      %360 = vmatpush1.msra.mxu0 %v359
      %361 = vmatprep.subr.mxu0 0.0
      %v362 = vand.u32 %v301, 4294901760
      %363 = vmatpush1.msra.mxu0 %v362
      %364 = vmatprep.subr.mxu0 0.0
      %v365 = vand.u32 %v300, 4294901760
      %366 = vmatpush1.msra.mxu0 %v365
      %367 = vmatprep.subr.mxu0 0.0
      %v368 = vand.u32 %v299, 4294901760
      %369 = vmatpush1.msra.mxu0 %v368
      %370 = vmatprep.subr.mxu0 0.0
      %v371 = vand.u32 %v298, 4294901760
      %372 = vmatpush1.msra.mxu0 %v371
      %373 = vmatprep.subr.mxu0 0.0
      %v374 = vand.u32 %v297, 4294901760
      %375 = vmatpush1.msra.mxu0 %v374
      %376 = vmatprep.subr.mxu0 0.0
      %v377 = vand.u32 %v296, 4294901760
      %378 = vmatpush1.msra.mxu0 %v377
      %379 = vmatprep.subr.mxu0 0.0
      %v380 = vand.u32 %v295, 4294901760
      %381 = vmatpush1.msra.mxu0 %v380
      %382 = vmatprep.subr.mxu0 0.0
      %v383 = vand.u32 %v326, 4294901760
      %384 = vmatpush2.msra.mxu0 %v383
      %385 = vmatprep.subr.mxu0 0.0
      %v386 = vand.u32 %v325, 4294901760
      %387 = vmatpush2.msra.mxu0 %v386
      %388 = vmatprep.subr.mxu0 0.0
      %v389 = vand.u32 %v324, 4294901760
      %390 = vmatpush2.msra.mxu0 %v389
      %391 = vmatprep.subr.mxu0 0.0
      %v392 = vand.u32 %v323, 4294901760
      %393 = vmatpush2.msra.mxu0 %v392
      %394 = vmatprep.subr.mxu0 0.0
      %v395 = vand.u32 %v322, 4294901760
      %396 = vmatpush2.msra.mxu0 %v395
      %397 = vmatprep.subr.mxu0 0.0
      %v398 = vand.u32 %v321, 4294901760
      %399 = vmatpush2.msra.mxu0 %v398
      %400 = vmatprep.subr.mxu0 0.0
      %v401 = vand.u32 %v320, 4294901760
      %402 = vmatpush2.msra.mxu0 %v401
      %403 = vmatprep.subr.mxu0 0.0
      %v404 = vand.u32 %v319, 4294901760
      %405 = vmatpush2.msra.mxu0 %v404
      %406 = vmatprep.subr.mxu0 0.0
      %v407 = vand.u32 %v318, 4294901760
      %408 = vmatpush2.msra.mxu0 %v407
      %409 = vmatprep.subr.mxu0 0.0
      %v410 = vand.u32 %v317, 4294901760
      %411 = vmatpush2.msra.mxu0 %v410
      %412 = vmatprep.subr.mxu0 0.0
      %v413 = vand.u32 %v316, 4294901760
      %414 = vmatpush2.msra.mxu0 %v413
      %415 = vmatprep.subr.mxu0 0.0
      %v416 = vand.u32 %v315, 4294901760
      %417 = vmatpush2.msra.mxu0 %v416
      %418 = vmatprep.subr.mxu0 0.0
      %v419 = vand.u32 %v314, 4294901760
      %420 = vmatpush2.msra.mxu0 %v419
      %421 = vmatprep.subr.mxu0 0.0
      %v422 = vand.u32 %v313, 4294901760
      %423 = vmatpush2.msra.mxu0 %v422
      %424 = vmatprep.subr.mxu0 0.0
      %v425 = vand.u32 %v312, 4294901760
      %426 = vmatpush2.msra.mxu0 %v425
      %427 = vmatprep.subr.mxu0 0.0
      %v428 = vand.u32 %v311, 4294901760
      %429 = vmatpush2.msra.mxu0 %v428
      %v430 = vand.u32 %v293, 4294901760
      %v431 = vsub.f32 %v293, %v430
      %v432 = vand.u32 %v431, 4294901760
      %v433 = vsub.f32 %v431, %v432
      %v434 = vand.u32 %v433, 4294901760
      %435 = vmatprep.mubr.f32.mxu0 %v434
      %v436 = vand.u32 %v294, 4294901760
      %v437 = vsub.f32 %v294, %v436
      %v438 = vand.u32 %v437, 4294901760
      %v439 = vsub.f32 %v437, %v438
      %v440 = vand.u32 %v439, 4294901760
      %441 = vmatmul.mubr.f32.gmra.mxu0 %v440
      %v442 = vpop.f32.mrf.mxu0
      %v443 = vadd.f32 %v332, %v442
      %v444 = vpop.f32.mrf.mxu0
      %445 = vdwg.mxu0
      %446 = vmatprep.subr.mxu0 0.0
      %v447 = vand.u32 %v310, 4294901760
      %v448 = vsub.f32 %v310, %v447
      %v449 = vand.u32 %v448, 4294901760
      %v450 = vsub.f32 %v448, %v449
      %v451 = vand.u32 %v450, 4294901760
      %452 = vmatpush1.msra.mxu0 %v451
      %453 = vmatprep.subr.mxu0 0.0
      %v454 = vand.u32 %v309, 4294901760
      %v455 = vsub.f32 %v309, %v454
      %v456 = vand.u32 %v455, 4294901760
      %v457 = vsub.f32 %v455, %v456
      %v458 = vand.u32 %v457, 4294901760
      %459 = vmatpush1.msra.mxu0 %v458
      %460 = vmatprep.subr.mxu0 0.0
      %v461 = vand.u32 %v308, 4294901760
      %v462 = vsub.f32 %v308, %v461
      %v463 = vand.u32 %v462, 4294901760
      %v464 = vsub.f32 %v462, %v463
      %v465 = vand.u32 %v464, 4294901760
      %466 = vmatpush1.msra.mxu0 %v465
      %467 = vmatprep.subr.mxu0 0.0
      %v468 = vand.u32 %v307, 4294901760
      %v469 = vsub.f32 %v307, %v468
      %v470 = vand.u32 %v469, 4294901760
      %v471 = vsub.f32 %v469, %v470
      %v472 = vand.u32 %v471, 4294901760
      %473 = vmatpush1.msra.mxu0 %v472
      %474 = vmatprep.subr.mxu0 0.0
      %v475 = vand.u32 %v306, 4294901760
      %v476 = vsub.f32 %v306, %v475
      %v477 = vand.u32 %v476, 4294901760
      %v478 = vsub.f32 %v476, %v477
      %v479 = vand.u32 %v478, 4294901760
      %480 = vmatpush1.msra.mxu0 %v479
      %481 = vmatprep.subr.mxu0 0.0
      %v482 = vand.u32 %v305, 4294901760
      %v483 = vsub.f32 %v305, %v482
      %v484 = vand.u32 %v483, 4294901760
      %v485 = vsub.f32 %v483, %v484
      %v486 = vand.u32 %v485, 4294901760
      %487 = vmatpush1.msra.mxu0 %v486
      %488 = vmatprep.subr.mxu0 0.0
      %v489 = vand.u32 %v304, 4294901760
      %v490 = vsub.f32 %v304, %v489
      %v491 = vand.u32 %v490, 4294901760
      %v492 = vsub.f32 %v490, %v491
      %v493 = vand.u32 %v492, 4294901760
      %494 = vmatpush1.msra.mxu0 %v493
      %495 = vmatprep.subr.mxu0 0.0
      %v496 = vand.u32 %v303, 4294901760
      %v497 = vsub.f32 %v303, %v496
      %v498 = vand.u32 %v497, 4294901760
      %v499 = vsub.f32 %v497, %v498
      %v500 = vand.u32 %v499, 4294901760
      %501 = vmatpush1.msra.mxu0 %v500
      %502 = vmatprep.subr.mxu0 0.0
      %v503 = vand.u32 %v302, 4294901760
      %v504 = vsub.f32 %v302, %v503
      %v505 = vand.u32 %v504, 4294901760
      %v506 = vsub.f32 %v504, %v505
      %v507 = vand.u32 %v506, 4294901760
      %508 = vmatpush1.msra.mxu0 %v507
      %509 = vmatprep.subr.mxu0 0.0
      %v510 = vand.u32 %v301, 4294901760
      %v511 = vsub.f32 %v301, %v510
      %v512 = vand.u32 %v511, 4294901760
      %v513 = vsub.f32 %v511, %v512
      %v514 = vand.u32 %v513, 4294901760
      %515 = vmatpush1.msra.mxu0 %v514
      %516 = vmatprep.subr.mxu0 0.0
      %v517 = vand.u32 %v300, 4294901760
      %v518 = vsub.f32 %v300, %v517
      %v519 = vand.u32 %v518, 4294901760
      %v520 = vsub.f32 %v518, %v519
      %v521 = vand.u32 %v520, 4294901760
      %522 = vmatpush1.msra.mxu0 %v521
      %523 = vmatprep.subr.mxu0 0.0
      %v524 = vand.u32 %v299, 4294901760
      %v525 = vsub.f32 %v299, %v524
      %v526 = vand.u32 %v525, 4294901760
      %v527 = vsub.f32 %v525, %v526
      %v528 = vand.u32 %v527, 4294901760
      %529 = vmatpush1.msra.mxu0 %v528
      %530 = vmatprep.subr.mxu0 0.0
      %v531 = vand.u32 %v298, 4294901760
      %v532 = vsub.f32 %v298, %v531
      %v533 = vand.u32 %v532, 4294901760
      %v534 = vsub.f32 %v532, %v533
      %v535 = vand.u32 %v534, 4294901760
      %536 = vmatpush1.msra.mxu0 %v535
      %537 = vmatprep.subr.mxu0 0.0
      %v538 = vand.u32 %v297, 4294901760
      %v539 = vsub.f32 %v297, %v538
      %v540 = vand.u32 %v539, 4294901760
      %v541 = vsub.f32 %v539, %v540
      %v542 = vand.u32 %v541, 4294901760
      %543 = vmatpush1.msra.mxu0 %v542
      %544 = vmatprep.subr.mxu0 0.0
      %v545 = vand.u32 %v296, 4294901760
      %v546 = vsub.f32 %v296, %v545
      %v547 = vand.u32 %v546, 4294901760
      %v548 = vsub.f32 %v546, %v547
      %v549 = vand.u32 %v548, 4294901760
      %550 = vmatpush1.msra.mxu0 %v549
      %551 = vmatprep.subr.mxu0 0.0
      %v552 = vand.u32 %v295, 4294901760
      %v553 = vsub.f32 %v295, %v552
      %v554 = vand.u32 %v553, 4294901760
      %v555 = vsub.f32 %v553, %v554
      %v556 = vand.u32 %v555, 4294901760
      %557 = vmatpush1.msra.mxu0 %v556
      %558 = vmatprep.subr.mxu0 0.0
      %v559 = vand.u32 %v326, 4294901760
      %v560 = vsub.f32 %v326, %v559
      %v561 = vand.u32 %v560, 4294901760
      %v562 = vsub.f32 %v560, %v561
      %v563 = vand.u32 %v562, 4294901760
      %564 = vmatpush2.msra.mxu0 %v563
      %565 = vmatprep.subr.mxu0 0.0
      %v566 = vand.u32 %v325, 4294901760
      %v567 = vsub.f32 %v325, %v566
      %v568 = vand.u32 %v567, 4294901760
      %v569 = vsub.f32 %v567, %v568
      %v570 = vand.u32 %v569, 4294901760
      %571 = vmatpush2.msra.mxu0 %v570
      %572 = vmatprep.subr.mxu0 0.0
      %v573 = vand.u32 %v324, 4294901760
      %v574 = vsub.f32 %v324, %v573
      %v575 = vand.u32 %v574, 4294901760
      %v576 = vsub.f32 %v574, %v575
      %v577 = vand.u32 %v576, 4294901760
      %578 = vmatpush2.msra.mxu0 %v577
      %579 = vmatprep.subr.mxu0 0.0
      %v580 = vand.u32 %v323, 4294901760
      %v581 = vsub.f32 %v323, %v580
      %v582 = vand.u32 %v581, 4294901760
      %v583 = vsub.f32 %v581, %v582
      %v584 = vand.u32 %v583, 4294901760
      %585 = vmatpush2.msra.mxu0 %v584
      %586 = vmatprep.subr.mxu0 0.0
      %v587 = vand.u32 %v322, 4294901760
      %v588 = vsub.f32 %v322, %v587
      %v589 = vand.u32 %v588, 4294901760
      %v590 = vsub.f32 %v588, %v589
      %v591 = vand.u32 %v590, 4294901760
      %592 = vmatpush2.msra.mxu0 %v591
      %593 = vmatprep.subr.mxu0 0.0
      %v594 = vand.u32 %v321, 4294901760
      %v595 = vsub.f32 %v321, %v594
      %v596 = vand.u32 %v595, 4294901760
      %v597 = vsub.f32 %v595, %v596
      %v598 = vand.u32 %v597, 4294901760
      %599 = vmatpush2.msra.mxu0 %v598
      %600 = vmatprep.subr.mxu0 0.0
      %v601 = vand.u32 %v320, 4294901760
      %v602 = vsub.f32 %v320, %v601
      %v603 = vand.u32 %v602, 4294901760
      %v604 = vsub.f32 %v602, %v603
      %v605 = vand.u32 %v604, 4294901760
      %606 = vmatpush2.msra.mxu0 %v605
      %607 = vmatprep.subr.mxu0 0.0
      %v608 = vand.u32 %v319, 4294901760
      %v609 = vsub.f32 %v319, %v608
      %v610 = vand.u32 %v609, 4294901760
      %v611 = vsub.f32 %v609, %v610
      %v612 = vand.u32 %v611, 4294901760
      %613 = vmatpush2.msra.mxu0 %v612
      %614 = vmatprep.subr.mxu0 0.0
      %v615 = vand.u32 %v318, 4294901760
      %v616 = vsub.f32 %v318, %v615
      %v617 = vand.u32 %v616, 4294901760
      %v618 = vsub.f32 %v616, %v617
      %v619 = vand.u32 %v618, 4294901760
      %620 = vmatpush2.msra.mxu0 %v619
      %621 = vmatprep.subr.mxu0 0.0
      %v622 = vand.u32 %v317, 4294901760
      %v623 = vsub.f32 %v317, %v622
      %v624 = vand.u32 %v623, 4294901760
      %v625 = vsub.f32 %v623, %v624
      %v626 = vand.u32 %v625, 4294901760
      %627 = vmatpush2.msra.mxu0 %v626
      %628 = vmatprep.subr.mxu0 0.0
      %v629 = vand.u32 %v316, 4294901760
      %v630 = vsub.f32 %v316, %v629
      %v631 = vand.u32 %v630, 4294901760
      %v632 = vsub.f32 %v630, %v631
      %v633 = vand.u32 %v632, 4294901760
      %634 = vmatpush2.msra.mxu0 %v633
      %635 = vmatprep.subr.mxu0 0.0
      %v636 = vand.u32 %v315, 4294901760
      %v637 = vsub.f32 %v315, %v636
      %v638 = vand.u32 %v637, 4294901760
      %v639 = vsub.f32 %v637, %v638
      %v640 = vand.u32 %v639, 4294901760
      %641 = vmatpush2.msra.mxu0 %v640
      %642 = vmatprep.subr.mxu0 0.0
      %v643 = vand.u32 %v314, 4294901760
      %v644 = vsub.f32 %v314, %v643
      %v645 = vand.u32 %v644, 4294901760
      %v646 = vsub.f32 %v644, %v645
      %v647 = vand.u32 %v646, 4294901760
      %648 = vmatpush2.msra.mxu0 %v647
      %649 = vmatprep.subr.mxu0 0.0
      %v650 = vand.u32 %v313, 4294901760
      %v651 = vsub.f32 %v313, %v650
      %v652 = vand.u32 %v651, 4294901760
      %v653 = vsub.f32 %v651, %v652
      %v654 = vand.u32 %v653, 4294901760
      %655 = vmatpush2.msra.mxu0 %v654
      %656 = vmatprep.subr.mxu0 0.0
      %v657 = vand.u32 %v312, 4294901760
      %v658 = vsub.f32 %v312, %v657
      %v659 = vand.u32 %v658, 4294901760
      %v660 = vsub.f32 %v658, %v659
      %v661 = vand.u32 %v660, 4294901760
      %662 = vmatpush2.msra.mxu0 %v661
      %663 = vmatprep.subr.mxu0 0.0
      %v664 = vand.u32 %v311, 4294901760
      %v665 = vsub.f32 %v311, %v664
      %v666 = vand.u32 %v665, 4294901760
      %v667 = vsub.f32 %v665, %v666
      %v668 = vand.u32 %v667, 4294901760
      %669 = vmatpush2.msra.mxu0 %v668
      %v670 = vand.u32 %v293, 4294901760
      %671 = vmatprep.mubr.f32.mxu0 %v670
      %v672 = vand.u32 %v294, 4294901760
      %673 = vmatmul.mubr.f32.gmra.mxu0 %v672
      %v674 = vpop.f32.mrf.mxu0
      %v675 = vadd.f32 %v443, %v674
      %v676 = vpop.f32.mrf.mxu0
      %677 = vdwg.mxu0
      %678 = vmatprep.subr.mxu0 0.0
      %v679 = vand.u32 %v310, 4294901760
      %v680 = vsub.f32 %v310, %v679
      %681 = vmatpush1.msra.mxu0 %v680
      %682 = vmatprep.subr.mxu0 0.0
      %v683 = vand.u32 %v309, 4294901760
      %v684 = vsub.f32 %v309, %v683
      %685 = vmatpush1.msra.mxu0 %v684
      %686 = vmatprep.subr.mxu0 0.0
      %v687 = vand.u32 %v308, 4294901760
      %v688 = vsub.f32 %v308, %v687
      %689 = vmatpush1.msra.mxu0 %v688
      %690 = vmatprep.subr.mxu0 0.0
      %v691 = vand.u32 %v307, 4294901760
      %v692 = vsub.f32 %v307, %v691
      %693 = vmatpush1.msra.mxu0 %v692
      %694 = vmatprep.subr.mxu0 0.0
      %v695 = vand.u32 %v306, 4294901760
      %v696 = vsub.f32 %v306, %v695
      %697 = vmatpush1.msra.mxu0 %v696
      %698 = vmatprep.subr.mxu0 0.0
      %v699 = vand.u32 %v305, 4294901760
      %v700 = vsub.f32 %v305, %v699
      %701 = vmatpush1.msra.mxu0 %v700
      %702 = vmatprep.subr.mxu0 0.0
      %v703 = vand.u32 %v304, 4294901760
      %v704 = vsub.f32 %v304, %v703
      %705 = vmatpush1.msra.mxu0 %v704
      %706 = vmatprep.subr.mxu0 0.0
      %v707 = vand.u32 %v303, 4294901760
      %v708 = vsub.f32 %v303, %v707
      %709 = vmatpush1.msra.mxu0 %v708
      %710 = vmatprep.subr.mxu0 0.0
      %v711 = vand.u32 %v302, 4294901760
      %v712 = vsub.f32 %v302, %v711
      %713 = vmatpush1.msra.mxu0 %v712
      %714 = vmatprep.subr.mxu0 0.0
      %v715 = vand.u32 %v301, 4294901760
      %v716 = vsub.f32 %v301, %v715
      %717 = vmatpush1.msra.mxu0 %v716
      %718 = vmatprep.subr.mxu0 0.0
      %v719 = vand.u32 %v300, 4294901760
      %v720 = vsub.f32 %v300, %v719
      %721 = vmatpush1.msra.mxu0 %v720
      %722 = vmatprep.subr.mxu0 0.0
      %v723 = vand.u32 %v299, 4294901760
      %v724 = vsub.f32 %v299, %v723
      %725 = vmatpush1.msra.mxu0 %v724
      %726 = vmatprep.subr.mxu0 0.0
      %v727 = vand.u32 %v298, 4294901760
      %v728 = vsub.f32 %v298, %v727
      %729 = vmatpush1.msra.mxu0 %v728
      %730 = vmatprep.subr.mxu0 0.0
      %v731 = vand.u32 %v297, 4294901760
      %v732 = vsub.f32 %v297, %v731
      %733 = vmatpush1.msra.mxu0 %v732
      %734 = vmatprep.subr.mxu0 0.0
      %v735 = vand.u32 %v296, 4294901760
      %v736 = vsub.f32 %v296, %v735
      %737 = vmatpush1.msra.mxu0 %v736
      %738 = vmatprep.subr.mxu0 0.0
      %v739 = vand.u32 %v295, 4294901760
      %v740 = vsub.f32 %v295, %v739
      %741 = vmatpush1.msra.mxu0 %v740
      %742 = vmatprep.subr.mxu0 0.0
      %v743 = vand.u32 %v326, 4294901760
      %v744 = vsub.f32 %v326, %v743
      %745 = vmatpush2.msra.mxu0 %v744
      %746 = vmatprep.subr.mxu0 0.0
      %v747 = vand.u32 %v325, 4294901760
      %v748 = vsub.f32 %v325, %v747
      %749 = vmatpush2.msra.mxu0 %v748
      %750 = vmatprep.subr.mxu0 0.0
      %v751 = vand.u32 %v324, 4294901760
      %v752 = vsub.f32 %v324, %v751
      %753 = vmatpush2.msra.mxu0 %v752
      %754 = vmatprep.subr.mxu0 0.0
      %v755 = vand.u32 %v323, 4294901760
      %v756 = vsub.f32 %v323, %v755
      %757 = vmatpush2.msra.mxu0 %v756
      %758 = vmatprep.subr.mxu0 0.0
      %v759 = vand.u32 %v322, 4294901760
      %v760 = vsub.f32 %v322, %v759
      %761 = vmatpush2.msra.mxu0 %v760
      %762 = vmatprep.subr.mxu0 0.0
      %v763 = vand.u32 %v321, 4294901760
      %v764 = vsub.f32 %v321, %v763
      %765 = vmatpush2.msra.mxu0 %v764
      %766 = vmatprep.subr.mxu0 0.0
      %v767 = vand.u32 %v320, 4294901760
      %v768 = vsub.f32 %v320, %v767
      %769 = vmatpush2.msra.mxu0 %v768
      %770 = vmatprep.subr.mxu0 0.0
      %v771 = vand.u32 %v319, 4294901760
      %v772 = vsub.f32 %v319, %v771
      %773 = vmatpush2.msra.mxu0 %v772
      %774 = vmatprep.subr.mxu0 0.0
      %v775 = vand.u32 %v318, 4294901760
      %v776 = vsub.f32 %v318, %v775
      %777 = vmatpush2.msra.mxu0 %v776
      %778 = vmatprep.subr.mxu0 0.0
      %v779 = vand.u32 %v317, 4294901760
      %v780 = vsub.f32 %v317, %v779
      %781 = vmatpush2.msra.mxu0 %v780
      %782 = vmatprep.subr.mxu0 0.0
      %v783 = vand.u32 %v316, 4294901760
      %v784 = vsub.f32 %v316, %v783
      %785 = vmatpush2.msra.mxu0 %v784
      %786 = vmatprep.subr.mxu0 0.0
      %v787 = vand.u32 %v315, 4294901760
      %v788 = vsub.f32 %v315, %v787
      %789 = vmatpush2.msra.mxu0 %v788
      %790 = vmatprep.subr.mxu0 0.0
      %v791 = vand.u32 %v314, 4294901760
      %v792 = vsub.f32 %v314, %v791
      %793 = vmatpush2.msra.mxu0 %v792
      %794 = vmatprep.subr.mxu0 0.0
      %v795 = vand.u32 %v313, 4294901760
      %v796 = vsub.f32 %v313, %v795
      %797 = vmatpush2.msra.mxu0 %v796
      %798 = vmatprep.subr.mxu0 0.0
      %v799 = vand.u32 %v312, 4294901760
      %v800 = vsub.f32 %v312, %v799
      %801 = vmatpush2.msra.mxu0 %v800
      %802 = vmatprep.subr.mxu0 0.0
      %v803 = vand.u32 %v311, 4294901760
      %v804 = vsub.f32 %v311, %v803
      %805 = vmatpush2.msra.mxu0 %v804
      %v806 = vand.u32 %v293, 4294901760
      %v807 = vsub.f32 %v293, %v806
      %808 = vmatprep.mubr.f32.mxu0 %v807
      %v809 = vand.u32 %v294, 4294901760
      %v810 = vsub.f32 %v294, %v809
      %811 = vmatmul.mubr.f32.gmra.mxu0 %v810
      %v812 = vpop.f32.mrf.mxu0
      %v813 = vadd.f32 %v675, %v812
      %v814 = vpop.f32.mrf.mxu0
      %815 = vdwg.mxu0
      %816 = vmatprep.subr.mxu0 0.0
      %v817 = vand.u32 %v310, 4294901760
      %818 = vmatpush1.msra.mxu0 %v817
      %819 = vmatprep.subr.mxu0 0.0
      %v820 = vand.u32 %v309, 4294901760
      %821 = vmatpush1.msra.mxu0 %v820
      %822 = vmatprep.subr.mxu0 0.0
      %v823 = vand.u32 %v308, 4294901760
      %824 = vmatpush1.msra.mxu0 %v823
      %825 = vmatprep.subr.mxu0 0.0
      %v826 = vand.u32 %v307, 4294901760
      %827 = vmatpush1.msra.mxu0 %v826
      %828 = vmatprep.subr.mxu0 0.0
      %v829 = vand.u32 %v306, 4294901760
      %830 = vmatpush1.msra.mxu0 %v829
      %831 = vmatprep.subr.mxu0 0.0
      %v832 = vand.u32 %v305, 4294901760
      %833 = vmatpush1.msra.mxu0 %v832
      %834 = vmatprep.subr.mxu0 0.0
      %v835 = vand.u32 %v304, 4294901760
      %836 = vmatpush1.msra.mxu0 %v835
      %837 = vmatprep.subr.mxu0 0.0
      %v838 = vand.u32 %v303, 4294901760
      %839 = vmatpush1.msra.mxu0 %v838
      %840 = vmatprep.subr.mxu0 0.0
      %v841 = vand.u32 %v302, 4294901760
      %842 = vmatpush1.msra.mxu0 %v841
      %843 = vmatprep.subr.mxu0 0.0
      %v844 = vand.u32 %v301, 4294901760
      %845 = vmatpush1.msra.mxu0 %v844
      %846 = vmatprep.subr.mxu0 0.0
      %v847 = vand.u32 %v300, 4294901760
      %848 = vmatpush1.msra.mxu0 %v847
      %849 = vmatprep.subr.mxu0 0.0
      %v850 = vand.u32 %v299, 4294901760
      %851 = vmatpush1.msra.mxu0 %v850
      %852 = vmatprep.subr.mxu0 0.0
      %v853 = vand.u32 %v298, 4294901760
      %854 = vmatpush1.msra.mxu0 %v853
      %855 = vmatprep.subr.mxu0 0.0
      %v856 = vand.u32 %v297, 4294901760
      %857 = vmatpush1.msra.mxu0 %v856
      %858 = vmatprep.subr.mxu0 0.0
      %v859 = vand.u32 %v296, 4294901760
      %860 = vmatpush1.msra.mxu0 %v859
      %861 = vmatprep.subr.mxu0 0.0
      %v862 = vand.u32 %v295, 4294901760
      %863 = vmatpush1.msra.mxu0 %v862
      %864 = vmatprep.subr.mxu0 0.0
      %v865 = vand.u32 %v326, 4294901760
      %866 = vmatpush2.msra.mxu0 %v865
      %867 = vmatprep.subr.mxu0 0.0
      %v868 = vand.u32 %v325, 4294901760
      %869 = vmatpush2.msra.mxu0 %v868
      %870 = vmatprep.subr.mxu0 0.0
      %v871 = vand.u32 %v324, 4294901760
      %872 = vmatpush2.msra.mxu0 %v871
      %873 = vmatprep.subr.mxu0 0.0
      %v874 = vand.u32 %v323, 4294901760
      %875 = vmatpush2.msra.mxu0 %v874
      %876 = vmatprep.subr.mxu0 0.0
      %v877 = vand.u32 %v322, 4294901760
      %878 = vmatpush2.msra.mxu0 %v877
      %879 = vmatprep.subr.mxu0 0.0
      %v880 = vand.u32 %v321, 4294901760
      %881 = vmatpush2.msra.mxu0 %v880
      %882 = vmatprep.subr.mxu0 0.0
      %v883 = vand.u32 %v320, 4294901760
      %884 = vmatpush2.msra.mxu0 %v883
      %885 = vmatprep.subr.mxu0 0.0
      %v886 = vand.u32 %v319, 4294901760
      %887 = vmatpush2.msra.mxu0 %v886
      %888 = vmatprep.subr.mxu0 0.0
      %v889 = vand.u32 %v318, 4294901760
      %890 = vmatpush2.msra.mxu0 %v889
      %891 = vmatprep.subr.mxu0 0.0
      %v892 = vand.u32 %v317, 4294901760
      %893 = vmatpush2.msra.mxu0 %v892
      %894 = vmatprep.subr.mxu0 0.0
      %v895 = vand.u32 %v316, 4294901760
      %896 = vmatpush2.msra.mxu0 %v895
      %897 = vmatprep.subr.mxu0 0.0
      %v898 = vand.u32 %v315, 4294901760
      %899 = vmatpush2.msra.mxu0 %v898
      %900 = vmatprep.subr.mxu0 0.0
      %v901 = vand.u32 %v314, 4294901760
      %902 = vmatpush2.msra.mxu0 %v901
      %903 = vmatprep.subr.mxu0 0.0
      %v904 = vand.u32 %v313, 4294901760
      %905 = vmatpush2.msra.mxu0 %v904
      %906 = vmatprep.subr.mxu0 0.0
      %v907 = vand.u32 %v312, 4294901760
      %908 = vmatpush2.msra.mxu0 %v907
      %909 = vmatprep.subr.mxu0 0.0
      %v910 = vand.u32 %v311, 4294901760
      %911 = vmatpush2.msra.mxu0 %v910
      %v912 = vand.u32 %v293, 4294901760
      %v913 = vsub.f32 %v293, %v912
      %v914 = vand.u32 %v913, 4294901760
      %915 = vmatprep.mubr.f32.mxu0 %v914
      %v916 = vand.u32 %v294, 4294901760
      %v917 = vsub.f32 %v294, %v916
      %v918 = vand.u32 %v917, 4294901760
      %919 = vmatmul.mubr.f32.gmra.mxu0 %v918
      %v920 = vpop.f32.mrf.mxu0
      %v921 = vadd.f32 %v813, %v920
      %v922 = vpop.f32.mrf.mxu0
      %923 = vdwg.mxu0
      %924 = vmatprep.subr.mxu0 0.0
      %v925 = vand.u32 %v310, 4294901760
      %v926 = vsub.f32 %v310, %v925
      %v927 = vand.u32 %v926, 4294901760
      %928 = vmatpush1.msra.mxu0 %v927
      %929 = vmatprep.subr.mxu0 0.0
      %v930 = vand.u32 %v309, 4294901760
      %v931 = vsub.f32 %v309, %v930
      %v932 = vand.u32 %v931, 4294901760
      %933 = vmatpush1.msra.mxu0 %v932
      %934 = vmatprep.subr.mxu0 0.0
      %v935 = vand.u32 %v308, 4294901760
      %v936 = vsub.f32 %v308, %v935
      %v937 = vand.u32 %v936, 4294901760
      %938 = vmatpush1.msra.mxu0 %v937
      %939 = vmatprep.subr.mxu0 0.0
      %v940 = vand.u32 %v307, 4294901760
      %v941 = vsub.f32 %v307, %v940
      %v942 = vand.u32 %v941, 4294901760
      %943 = vmatpush1.msra.mxu0 %v942
      %944 = vmatprep.subr.mxu0 0.0
      %v945 = vand.u32 %v306, 4294901760
      %v946 = vsub.f32 %v306, %v945
      %v947 = vand.u32 %v946, 4294901760
      %948 = vmatpush1.msra.mxu0 %v947
      %949 = vmatprep.subr.mxu0 0.0
      %v950 = vand.u32 %v305, 4294901760
      %v951 = vsub.f32 %v305, %v950
      %v952 = vand.u32 %v951, 4294901760
      %953 = vmatpush1.msra.mxu0 %v952
      %954 = vmatprep.subr.mxu0 0.0
      %v955 = vand.u32 %v304, 4294901760
      %v956 = vsub.f32 %v304, %v955
      %v957 = vand.u32 %v956, 4294901760
      %958 = vmatpush1.msra.mxu0 %v957
      %959 = vmatprep.subr.mxu0 0.0
      %v960 = vand.u32 %v303, 4294901760
      %v961 = vsub.f32 %v303, %v960
      %v962 = vand.u32 %v961, 4294901760
      %963 = vmatpush1.msra.mxu0 %v962
      %964 = vmatprep.subr.mxu0 0.0
      %v965 = vand.u32 %v302, 4294901760
      %v966 = vsub.f32 %v302, %v965
      %v967 = vand.u32 %v966, 4294901760
      %968 = vmatpush1.msra.mxu0 %v967
      %969 = vmatprep.subr.mxu0 0.0
      %v970 = vand.u32 %v301, 4294901760
      %v971 = vsub.f32 %v301, %v970
      %v972 = vand.u32 %v971, 4294901760
      %973 = vmatpush1.msra.mxu0 %v972
      %974 = vmatprep.subr.mxu0 0.0
      %v975 = vand.u32 %v300, 4294901760
      %v976 = vsub.f32 %v300, %v975
      %v977 = vand.u32 %v976, 4294901760
      %978 = vmatpush1.msra.mxu0 %v977
      %979 = vmatprep.subr.mxu0 0.0
      %v980 = vand.u32 %v299, 4294901760
      %v981 = vsub.f32 %v299, %v980
      %v982 = vand.u32 %v981, 4294901760
      %983 = vmatpush1.msra.mxu0 %v982
      %984 = vmatprep.subr.mxu0 0.0
      %v985 = vand.u32 %v298, 4294901760
      %v986 = vsub.f32 %v298, %v985
      %v987 = vand.u32 %v986, 4294901760
      %988 = vmatpush1.msra.mxu0 %v987
      %989 = vmatprep.subr.mxu0 0.0
      %v990 = vand.u32 %v297, 4294901760
      %v991 = vsub.f32 %v297, %v990
      %v992 = vand.u32 %v991, 4294901760
      %993 = vmatpush1.msra.mxu0 %v992
      %994 = vmatprep.subr.mxu0 0.0
      %v995 = vand.u32 %v296, 4294901760
      %v996 = vsub.f32 %v296, %v995
      %v997 = vand.u32 %v996, 4294901760
      %998 = vmatpush1.msra.mxu0 %v997
      %999 = vmatprep.subr.mxu0 0.0
      %v1000 = vand.u32 %v295, 4294901760
      %v1001 = vsub.f32 %v295, %v1000
      %v1002 = vand.u32 %v1001, 4294901760
      %1003 = vmatpush1.msra.mxu0 %v1002
      %1004 = vmatprep.subr.mxu0 0.0
      %v1005 = vand.u32 %v326, 4294901760
      %v1006 = vsub.f32 %v326, %v1005
      %v1007 = vand.u32 %v1006, 4294901760
      %1008 = vmatpush2.msra.mxu0 %v1007
      %1009 = vmatprep.subr.mxu0 0.0
      %v1010 = vand.u32 %v325, 4294901760
      %v1011 = vsub.f32 %v325, %v1010
      %v1012 = vand.u32 %v1011, 4294901760
      %1013 = vmatpush2.msra.mxu0 %v1012
      %1014 = vmatprep.subr.mxu0 0.0
      %v1015 = vand.u32 %v324, 4294901760
      %v1016 = vsub.f32 %v324, %v1015
      %v1017 = vand.u32 %v1016, 4294901760
      %1018 = vmatpush2.msra.mxu0 %v1017
      %1019 = vmatprep.subr.mxu0 0.0
      %v1020 = vand.u32 %v323, 4294901760
      %v1021 = vsub.f32 %v323, %v1020
      %v1022 = vand.u32 %v1021, 4294901760
      %1023 = vmatpush2.msra.mxu0 %v1022
      %1024 = vmatprep.subr.mxu0 0.0
      %v1025 = vand.u32 %v322, 4294901760
      %v1026 = vsub.f32 %v322, %v1025
      %v1027 = vand.u32 %v1026, 4294901760
      %1028 = vmatpush2.msra.mxu0 %v1027
      %1029 = vmatprep.subr.mxu0 0.0
      %v1030 = vand.u32 %v321, 4294901760
      %v1031 = vsub.f32 %v321, %v1030
      %v1032 = vand.u32 %v1031, 4294901760
      %1033 = vmatpush2.msra.mxu0 %v1032
      %1034 = vmatprep.subr.mxu0 0.0
      %v1035 = vand.u32 %v320, 4294901760
      %v1036 = vsub.f32 %v320, %v1035
      %v1037 = vand.u32 %v1036, 4294901760
      %1038 = vmatpush2.msra.mxu0 %v1037
      %1039 = vmatprep.subr.mxu0 0.0
      %v1040 = vand.u32 %v319, 4294901760
      %v1041 = vsub.f32 %v319, %v1040
      %v1042 = vand.u32 %v1041, 4294901760
      %1043 = vmatpush2.msra.mxu0 %v1042
      %1044 = vmatprep.subr.mxu0 0.0
      %v1045 = vand.u32 %v318, 4294901760
      %v1046 = vsub.f32 %v318, %v1045
      %v1047 = vand.u32 %v1046, 4294901760
      %1048 = vmatpush2.msra.mxu0 %v1047
      %1049 = vmatprep.subr.mxu0 0.0
      %v1050 = vand.u32 %v317, 4294901760
      %v1051 = vsub.f32 %v317, %v1050
      %v1052 = vand.u32 %v1051, 4294901760
      %1053 = vmatpush2.msra.mxu0 %v1052
      %1054 = vmatprep.subr.mxu0 0.0
      %v1055 = vand.u32 %v316, 4294901760
      %v1056 = vsub.f32 %v316, %v1055
      %v1057 = vand.u32 %v1056, 4294901760
      %1058 = vmatpush2.msra.mxu0 %v1057
      %1059 = vmatprep.subr.mxu0 0.0
      %v1060 = vand.u32 %v315, 4294901760
      %v1061 = vsub.f32 %v315, %v1060
      %v1062 = vand.u32 %v1061, 4294901760
      %1063 = vmatpush2.msra.mxu0 %v1062
      %1064 = vmatprep.subr.mxu0 0.0
      %v1065 = vand.u32 %v314, 4294901760
      %v1066 = vsub.f32 %v314, %v1065
      %v1067 = vand.u32 %v1066, 4294901760
      %1068 = vmatpush2.msra.mxu0 %v1067
      %1069 = vmatprep.subr.mxu0 0.0
      %v1070 = vand.u32 %v313, 4294901760
      %v1071 = vsub.f32 %v313, %v1070
      %v1072 = vand.u32 %v1071, 4294901760
      %1073 = vmatpush2.msra.mxu0 %v1072
      %1074 = vmatprep.subr.mxu0 0.0
      %v1075 = vand.u32 %v312, 4294901760
      %v1076 = vsub.f32 %v312, %v1075
      %v1077 = vand.u32 %v1076, 4294901760
      %1078 = vmatpush2.msra.mxu0 %v1077
      %1079 = vmatprep.subr.mxu0 0.0
      %v1080 = vand.u32 %v311, 4294901760
      %v1081 = vsub.f32 %v311, %v1080
      %v1082 = vand.u32 %v1081, 4294901760
      %1083 = vmatpush2.msra.mxu0 %v1082
      %v1084 = vand.u32 %v293, 4294901760
      %1085 = vmatprep.mubr.f32.mxu0 %v1084
      %v1086 = vand.u32 %v294, 4294901760
      %1087 = vmatmul.mubr.f32.gmra.mxu0 %v1086
      %v1088 = vpop.f32.mrf.mxu0
      %v1089 = vadd.f32 %v921, %v1088
      %v1090 = vpop.f32.mrf.mxu0
      %1091 = vdwg.mxu0
      %1092 = vmatprep.subr.mxu0 0.0
      %v1093 = vand.u32 %v310, 4294901760
      %1094 = vmatpush1.msra.mxu0 %v1093
      %1095 = vmatprep.subr.mxu0 0.0
      %v1096 = vand.u32 %v309, 4294901760
      %1097 = vmatpush1.msra.mxu0 %v1096
      %1098 = vmatprep.subr.mxu0 0.0
      %v1099 = vand.u32 %v308, 4294901760
      %1100 = vmatpush1.msra.mxu0 %v1099
      %1101 = vmatprep.subr.mxu0 0.0
      %v1102 = vand.u32 %v307, 4294901760
      %1103 = vmatpush1.msra.mxu0 %v1102
      %1104 = vmatprep.subr.mxu0 0.0
      %v1105 = vand.u32 %v306, 4294901760
      %1106 = vmatpush1.msra.mxu0 %v1105
      %1107 = vmatprep.subr.mxu0 0.0
      %v1108 = vand.u32 %v305, 4294901760
      %1109 = vmatpush1.msra.mxu0 %v1108
      %1110 = vmatprep.subr.mxu0 0.0
      %v1111 = vand.u32 %v304, 4294901760
      %1112 = vmatpush1.msra.mxu0 %v1111
      %1113 = vmatprep.subr.mxu0 0.0
      %v1114 = vand.u32 %v303, 4294901760
      %1115 = vmatpush1.msra.mxu0 %v1114
      %1116 = vmatprep.subr.mxu0 0.0
      %v1117 = vand.u32 %v302, 4294901760
      %1118 = vmatpush1.msra.mxu0 %v1117
      %1119 = vmatprep.subr.mxu0 0.0
      %v1120 = vand.u32 %v301, 4294901760
      %1121 = vmatpush1.msra.mxu0 %v1120
      %1122 = vmatprep.subr.mxu0 0.0
      %v1123 = vand.u32 %v300, 4294901760
      %1124 = vmatpush1.msra.mxu0 %v1123
      %1125 = vmatprep.subr.mxu0 0.0
      %v1126 = vand.u32 %v299, 4294901760
      %1127 = vmatpush1.msra.mxu0 %v1126
      %1128 = vmatprep.subr.mxu0 0.0
      %v1129 = vand.u32 %v298, 4294901760
      %1130 = vmatpush1.msra.mxu0 %v1129
      %1131 = vmatprep.subr.mxu0 0.0
      %v1132 = vand.u32 %v297, 4294901760
      %1133 = vmatpush1.msra.mxu0 %v1132
      %1134 = vmatprep.subr.mxu0 0.0
      %v1135 = vand.u32 %v296, 4294901760
      %1136 = vmatpush1.msra.mxu0 %v1135
      %1137 = vmatprep.subr.mxu0 0.0
      %v1138 = vand.u32 %v295, 4294901760
      %1139 = vmatpush1.msra.mxu0 %v1138
      %1140 = vmatprep.subr.mxu0 0.0
      %v1141 = vand.u32 %v326, 4294901760
      %1142 = vmatpush2.msra.mxu0 %v1141
      %1143 = vmatprep.subr.mxu0 0.0
      %v1144 = vand.u32 %v325, 4294901760
      %1145 = vmatpush2.msra.mxu0 %v1144
      %1146 = vmatprep.subr.mxu0 0.0
      %v1147 = vand.u32 %v324, 4294901760
      %1148 = vmatpush2.msra.mxu0 %v1147
      %1149 = vmatprep.subr.mxu0 0.0
      %v1150 = vand.u32 %v323, 4294901760
      %1151 = vmatpush2.msra.mxu0 %v1150
      %1152 = vmatprep.subr.mxu0 0.0
      %v1153 = vand.u32 %v322, 4294901760
      %1154 = vmatpush2.msra.mxu0 %v1153
      %1155 = vmatprep.subr.mxu0 0.0
      %v1156 = vand.u32 %v321, 4294901760
      %1157 = vmatpush2.msra.mxu0 %v1156
      %1158 = vmatprep.subr.mxu0 0.0
      %v1159 = vand.u32 %v320, 4294901760
      %1160 = vmatpush2.msra.mxu0 %v1159
      %1161 = vmatprep.subr.mxu0 0.0
      %v1162 = vand.u32 %v319, 4294901760
      %1163 = vmatpush2.msra.mxu0 %v1162
      %1164 = vmatprep.subr.mxu0 0.0
      %v1165 = vand.u32 %v318, 4294901760
      %1166 = vmatpush2.msra.mxu0 %v1165
      %1167 = vmatprep.subr.mxu0 0.0
      %v1168 = vand.u32 %v317, 4294901760
      %1169 = vmatpush2.msra.mxu0 %v1168
      %1170 = vmatprep.subr.mxu0 0.0
      %v1171 = vand.u32 %v316, 4294901760
      %1172 = vmatpush2.msra.mxu0 %v1171
      %1173 = vmatprep.subr.mxu0 0.0
      %v1174 = vand.u32 %v315, 4294901760
      %1175 = vmatpush2.msra.mxu0 %v1174
      %1176 = vmatprep.subr.mxu0 0.0
      %v1177 = vand.u32 %v314, 4294901760
      %1178 = vmatpush2.msra.mxu0 %v1177
      %1179 = vmatprep.subr.mxu0 0.0
      %v1180 = vand.u32 %v313, 4294901760
      %1181 = vmatpush2.msra.mxu0 %v1180
      %1182 = vmatprep.subr.mxu0 0.0
      %v1183 = vand.u32 %v312, 4294901760
      %1184 = vmatpush2.msra.mxu0 %v1183
      %1185 = vmatprep.subr.mxu0 0.0
      %v1186 = vand.u32 %v311, 4294901760
      %1187 = vmatpush2.msra.mxu0 %v1186
      %v1188 = vand.u32 %v293, 4294901760
      %1189 = vmatprep.mubr.f32.mxu0 %v1188
      %v1190 = vand.u32 %v294, 4294901760
      %1191 = vmatmul.mubr.f32.gmra.mxu0 %v1190
      %v1192 = vpop.f32.mrf.mxu0
      %v1193 = vadd.f32 %v1089, %v1192
      %v1194 = vpop.f32.mrf.mxu0
      %1195 = vdwg.mxu0
      %v1196 = vmul.f32 %v293, 0.7
      %v1197 = vtanh.pop %v1193
      %v1198 = vmul.f32 %v1197, 0.3
      %v1199 = vadd.f32 %v1196, %v1198
      %1200 = vst [vmem:[#allocation2 + $0x8] sm:$0xff] %v1199
      %1201 = vst [vmem:[%s284] sm:$0xff] %v1199
      %v1202 = vld [vmem:[%s4] sm:$0xff]
      %v1203 = vld [vmem:[%s4 + $0x8] sm:$0xff]
      %v1204 = vld [vmem:[%s4 + $0x10] sm:$0xff]
      %v1205 = vld [vmem:[%s4 + $0x18] sm:$0xff]
      %v1206 = vld [vmem:[%s4 + $0x20] sm:$0xff]
      %v1207 = vld [vmem:[%s4 + $0x28] sm:$0xff]
      %v1208 = vld [vmem:[%s4 + $0x30] sm:$0xff]
      %v1209 = vld [vmem:[%s4 + $0x38] sm:$0xff]
      %v1210 = vld [vmem:[%s4 + $0x40] sm:$0xff]
      %v1211 = vld [vmem:[%s4 + $0x48] sm:$0xff]
      %v1212 = vld [vmem:[%s4 + $0x50] sm:$0xff]
      %v1213 = vld [vmem:[%s4 + $0x58] sm:$0xff]
      %v1214 = vld [vmem:[%s4 + $0x60] sm:$0xff]
      %v1215 = vld [vmem:[%s4 + $0x68] sm:$0xff]
      %v1216 = vld [vmem:[%s4 + $0x70] sm:$0xff]
      %v1217 = vld [vmem:[%s4 + $0x78] sm:$0xff]
      %v1218 = vld [vmem:[%s5] sm:$0x1]
      %v1220 = vlaneseq
      %v1221 = vshrl.u32 %v1220, 7
      %v1222 = vsub.s32 0, %v1221
      %v1223 = vrot.slane %v1218, %v1222
      %1225 = vmatprep.subr.mxu0 0.0
      %v1226 = vand.u32 %v1217, 4294901760
      %1227 = vmatpush1.msra.mxu0 %v1226
      %1228 = vmatprep.subr.mxu0 0.0
      %v1229 = vand.u32 %v1216, 4294901760
      %1230 = vmatpush1.msra.mxu0 %v1229
      %1231 = vmatprep.subr.mxu0 0.0
      %v1232 = vand.u32 %v1215, 4294901760
      %1233 = vmatpush1.msra.mxu0 %v1232
      %1234 = vmatprep.subr.mxu0 0.0
      %v1235 = vand.u32 %v1214, 4294901760
      %1236 = vmatpush1.msra.mxu0 %v1235
      %1237 = vmatprep.subr.mxu0 0.0
      %v1238 = vand.u32 %v1213, 4294901760
      %1239 = vmatpush1.msra.mxu0 %v1238
      %1240 = vmatprep.subr.mxu0 0.0
      %v1241 = vand.u32 %v1212, 4294901760
      %1242 = vmatpush1.msra.mxu0 %v1241
      %1243 = vmatprep.subr.mxu0 0.0
      %v1244 = vand.u32 %v1211, 4294901760
      %1245 = vmatpush1.msra.mxu0 %v1244
      %1246 = vmatprep.subr.mxu0 0.0
      %v1247 = vand.u32 %v1210, 4294901760
      %1248 = vmatpush1.msra.mxu0 %v1247
      %1249 = vmatprep.subr.mxu0 0.0
      %v1250 = vand.u32 %v1209, 4294901760
      %1251 = vmatpush1.msra.mxu0 %v1250
      %1252 = vmatprep.subr.mxu0 0.0
      %v1253 = vand.u32 %v1208, 4294901760
      %1254 = vmatpush1.msra.mxu0 %v1253
      %1255 = vmatprep.subr.mxu0 0.0
      %v1256 = vand.u32 %v1207, 4294901760
      %1257 = vmatpush1.msra.mxu0 %v1256
      %1258 = vmatprep.subr.mxu0 0.0
      %v1259 = vand.u32 %v1206, 4294901760
      %1260 = vmatpush1.msra.mxu0 %v1259
      %1261 = vmatprep.subr.mxu0 0.0
      %v1262 = vand.u32 %v1205, 4294901760
      %1263 = vmatpush1.msra.mxu0 %v1262
      %1264 = vmatprep.subr.mxu0 0.0
      %v1265 = vand.u32 %v1204, 4294901760
      %1266 = vmatpush1.msra.mxu0 %v1265
      %1267 = vmatprep.subr.mxu0 0.0
      %v1268 = vand.u32 %v1203, 4294901760
      %1269 = vmatpush1.msra.mxu0 %v1268
      %1270 = vmatprep.subr.mxu0 0.0
      %v1271 = vand.u32 %v1202, 4294901760
      %1272 = vmatpush1.msra.mxu0 %v1271
      %1273 = vmatprep.subr.mxu0 0.0
      %1274 = vmatpush2.msra.mxu0 0.0
      %1275 = vmatprep.subr.mxu0 0.0
      %1276 = vmatpush2.msra.mxu0 0.0
      %1277 = vmatprep.subr.mxu0 0.0
      %1278 = vmatpush2.msra.mxu0 0.0
      %1279 = vmatprep.subr.mxu0 0.0
      %1280 = vmatpush2.msra.mxu0 0.0
      %1281 = vmatprep.subr.mxu0 0.0
      %1282 = vmatpush2.msra.mxu0 0.0
      %1283 = vmatprep.subr.mxu0 0.0
      %1284 = vmatpush2.msra.mxu0 0.0
      %1285 = vmatprep.subr.mxu0 0.0
      %1286 = vmatpush2.msra.mxu0 0.0
      %1287 = vmatprep.subr.mxu0 0.0
      %1288 = vmatpush2.msra.mxu0 0.0
      %1289 = vmatprep.subr.mxu0 0.0
      %1290 = vmatpush2.msra.mxu0 0.0
      %1291 = vmatprep.subr.mxu0 0.0
      %1292 = vmatpush2.msra.mxu0 0.0
      %1293 = vmatprep.subr.mxu0 0.0
      %1294 = vmatpush2.msra.mxu0 0.0
      %1295 = vmatprep.subr.mxu0 0.0
      %1296 = vmatpush2.msra.mxu0 0.0
      %1297 = vmatprep.subr.mxu0 0.0
      %1298 = vmatpush2.msra.mxu0 0.0
      %1299 = vmatprep.subr.mxu0 0.0
      %1300 = vmatpush2.msra.mxu0 0.0
      %1301 = vmatprep.subr.mxu0 0.0
      %1302 = vmatpush2.msra.mxu0 0.0
      %1303 = vmatprep.subr.mxu0 0.0
      %1304 = vmatpush2.msra.mxu0 0.0
      %1305 = vmatprep.mubr.f32.mxu0 0.0
      %v1306 = vand.u32 %v1199, 4294901760
      %v1307 = vsub.f32 %v1199, %v1306
      %v1308 = vand.u32 %v1307, 4294901760
      %v1309 = vsub.f32 %v1307, %v1308
      %v1310 = vand.u32 %v1309, 4294901760
      %1311 = vmatmul.mubr.f32.gmra.mxu0 %v1310
      %v1312 = vpop.f32.mrf.mxu0
      %v1313 = vadd.f32 %v1223, %v1312
      %v1314 = vpop.f32.mrf.mxu0
      %1315 = vdwg.mxu0
      %1316 = vmatprep.subr.mxu0 0.0
      %v1317 = vand.u32 %v1217, 4294901760
      %v1318 = vsub.f32 %v1217, %v1317
      %v1319 = vand.u32 %v1318, 4294901760
      %v1320 = vsub.f32 %v1318, %v1319
      %v1321 = vand.u32 %v1320, 4294901760
      %1322 = vmatpush1.msra.mxu0 %v1321
      %1323 = vmatprep.subr.mxu0 0.0
      %v1324 = vand.u32 %v1216, 4294901760
      %v1325 = vsub.f32 %v1216, %v1324
      %v1326 = vand.u32 %v1325, 4294901760
      %v1327 = vsub.f32 %v1325, %v1326
      %v1328 = vand.u32 %v1327, 4294901760
      %1329 = vmatpush1.msra.mxu0 %v1328
      %1330 = vmatprep.subr.mxu0 0.0
      %v1331 = vand.u32 %v1215, 4294901760
      %v1332 = vsub.f32 %v1215, %v1331
      %v1333 = vand.u32 %v1332, 4294901760
      %v1334 = vsub.f32 %v1332, %v1333
      %v1335 = vand.u32 %v1334, 4294901760
      %1336 = vmatpush1.msra.mxu0 %v1335
      %1337 = vmatprep.subr.mxu0 0.0
      %v1338 = vand.u32 %v1214, 4294901760
      %v1339 = vsub.f32 %v1214, %v1338
      %v1340 = vand.u32 %v1339, 4294901760
      %v1341 = vsub.f32 %v1339, %v1340
      %v1342 = vand.u32 %v1341, 4294901760
      %1343 = vmatpush1.msra.mxu0 %v1342
      %1344 = vmatprep.subr.mxu0 0.0
      %v1345 = vand.u32 %v1213, 4294901760
      %v1346 = vsub.f32 %v1213, %v1345
      %v1347 = vand.u32 %v1346, 4294901760
      %v1348 = vsub.f32 %v1346, %v1347
      %v1349 = vand.u32 %v1348, 4294901760
      %1350 = vmatpush1.msra.mxu0 %v1349
      %1351 = vmatprep.subr.mxu0 0.0
      %v1352 = vand.u32 %v1212, 4294901760
      %v1353 = vsub.f32 %v1212, %v1352
      %v1354 = vand.u32 %v1353, 4294901760
      %v1355 = vsub.f32 %v1353, %v1354
      %v1356 = vand.u32 %v1355, 4294901760
      %1357 = vmatpush1.msra.mxu0 %v1356
      %1358 = vmatprep.subr.mxu0 0.0
      %v1359 = vand.u32 %v1211, 4294901760
      %v1360 = vsub.f32 %v1211, %v1359
      %v1361 = vand.u32 %v1360, 4294901760
      %v1362 = vsub.f32 %v1360, %v1361
      %v1363 = vand.u32 %v1362, 4294901760
      %1364 = vmatpush1.msra.mxu0 %v1363
      %1365 = vmatprep.subr.mxu0 0.0
      %v1366 = vand.u32 %v1210, 4294901760
      %v1367 = vsub.f32 %v1210, %v1366
      %v1368 = vand.u32 %v1367, 4294901760
      %v1369 = vsub.f32 %v1367, %v1368
      %v1370 = vand.u32 %v1369, 4294901760
      %1371 = vmatpush1.msra.mxu0 %v1370
      %1372 = vmatprep.subr.mxu0 0.0
      %v1373 = vand.u32 %v1209, 4294901760
      %v1374 = vsub.f32 %v1209, %v1373
      %v1375 = vand.u32 %v1374, 4294901760
      %v1376 = vsub.f32 %v1374, %v1375
      %v1377 = vand.u32 %v1376, 4294901760
      %1378 = vmatpush1.msra.mxu0 %v1377
      %1379 = vmatprep.subr.mxu0 0.0
      %v1380 = vand.u32 %v1208, 4294901760
      %v1381 = vsub.f32 %v1208, %v1380
      %v1382 = vand.u32 %v1381, 4294901760
      %v1383 = vsub.f32 %v1381, %v1382
      %v1384 = vand.u32 %v1383, 4294901760
      %1385 = vmatpush1.msra.mxu0 %v1384
      %1386 = vmatprep.subr.mxu0 0.0
      %v1387 = vand.u32 %v1207, 4294901760
      %v1388 = vsub.f32 %v1207, %v1387
      %v1389 = vand.u32 %v1388, 4294901760
      %v1390 = vsub.f32 %v1388, %v1389
      %v1391 = vand.u32 %v1390, 4294901760
      %1392 = vmatpush1.msra.mxu0 %v1391
      %1393 = vmatprep.subr.mxu0 0.0
      %v1394 = vand.u32 %v1206, 4294901760
      %v1395 = vsub.f32 %v1206, %v1394
      %v1396 = vand.u32 %v1395, 4294901760
      %v1397 = vsub.f32 %v1395, %v1396
      %v1398 = vand.u32 %v1397, 4294901760
      %1399 = vmatpush1.msra.mxu0 %v1398
      %1400 = vmatprep.subr.mxu0 0.0
      %v1401 = vand.u32 %v1205, 4294901760
      %v1402 = vsub.f32 %v1205, %v1401
      %v1403 = vand.u32 %v1402, 4294901760
      %v1404 = vsub.f32 %v1402, %v1403
      %v1405 = vand.u32 %v1404, 4294901760
      %1406 = vmatpush1.msra.mxu0 %v1405
      %1407 = vmatprep.subr.mxu0 0.0
      %v1408 = vand.u32 %v1204, 4294901760
      %v1409 = vsub.f32 %v1204, %v1408
      %v1410 = vand.u32 %v1409, 4294901760
      %v1411 = vsub.f32 %v1409, %v1410
      %v1412 = vand.u32 %v1411, 4294901760
      %1413 = vmatpush1.msra.mxu0 %v1412
      %1414 = vmatprep.subr.mxu0 0.0
      %v1415 = vand.u32 %v1203, 4294901760
      %v1416 = vsub.f32 %v1203, %v1415
      %v1417 = vand.u32 %v1416, 4294901760
      %v1418 = vsub.f32 %v1416, %v1417
      %v1419 = vand.u32 %v1418, 4294901760
      %1420 = vmatpush1.msra.mxu0 %v1419
      %1421 = vmatprep.subr.mxu0 0.0
      %v1422 = vand.u32 %v1202, 4294901760
      %v1423 = vsub.f32 %v1202, %v1422
      %v1424 = vand.u32 %v1423, 4294901760
      %v1425 = vsub.f32 %v1423, %v1424
      %v1426 = vand.u32 %v1425, 4294901760
      %1427 = vmatpush1.msra.mxu0 %v1426
      %1428 = vmatprep.subr.mxu0 0.0
      %1429 = vmatpush2.msra.mxu0 0.0
      %1430 = vmatprep.subr.mxu0 0.0
      %1431 = vmatpush2.msra.mxu0 0.0
      %1432 = vmatprep.subr.mxu0 0.0
      %1433 = vmatpush2.msra.mxu0 0.0
      %1434 = vmatprep.subr.mxu0 0.0
      %1435 = vmatpush2.msra.mxu0 0.0
      %1436 = vmatprep.subr.mxu0 0.0
      %1437 = vmatpush2.msra.mxu0 0.0
      %1438 = vmatprep.subr.mxu0 0.0
      %1439 = vmatpush2.msra.mxu0 0.0
      %1440 = vmatprep.subr.mxu0 0.0
      %1441 = vmatpush2.msra.mxu0 0.0
      %1442 = vmatprep.subr.mxu0 0.0
      %1443 = vmatpush2.msra.mxu0 0.0
      %1444 = vmatprep.subr.mxu0 0.0
      %1445 = vmatpush2.msra.mxu0 0.0
      %1446 = vmatprep.subr.mxu0 0.0
      %1447 = vmatpush2.msra.mxu0 0.0
      %1448 = vmatprep.subr.mxu0 0.0
      %1449 = vmatpush2.msra.mxu0 0.0
      %1450 = vmatprep.subr.mxu0 0.0
      %1451 = vmatpush2.msra.mxu0 0.0
      %1452 = vmatprep.subr.mxu0 0.0
      %1453 = vmatpush2.msra.mxu0 0.0
      %1454 = vmatprep.subr.mxu0 0.0
      %1455 = vmatpush2.msra.mxu0 0.0
      %1456 = vmatprep.subr.mxu0 0.0
      %1457 = vmatpush2.msra.mxu0 0.0
      %1458 = vmatprep.subr.mxu0 0.0
      %1459 = vmatpush2.msra.mxu0 0.0
      %1460 = vmatprep.mubr.f32.mxu0 0.0
      %v1461 = vand.u32 %v1199, 4294901760
      %1462 = vmatmul.mubr.f32.gmra.mxu0 %v1461
      %v1463 = vpop.f32.mrf.mxu0
      %v1464 = vadd.f32 %v1313, %v1463
      %v1465 = vpop.f32.mrf.mxu0
      %1466 = vdwg.mxu0
      %1467 = vmatprep.subr.mxu0 0.0
      %v1468 = vand.u32 %v1217, 4294901760
      %v1469 = vsub.f32 %v1217, %v1468
      %1470 = vmatpush1.msra.mxu0 %v1469
      %1471 = vmatprep.subr.mxu0 0.0
      %v1472 = vand.u32 %v1216, 4294901760
      %v1473 = vsub.f32 %v1216, %v1472
      %1474 = vmatpush1.msra.mxu0 %v1473
      %1475 = vmatprep.subr.mxu0 0.0
      %v1476 = vand.u32 %v1215, 4294901760
      %v1477 = vsub.f32 %v1215, %v1476
      %1478 = vmatpush1.msra.mxu0 %v1477
      %1479 = vmatprep.subr.mxu0 0.0
      %v1480 = vand.u32 %v1214, 4294901760
      %v1481 = vsub.f32 %v1214, %v1480
      %1482 = vmatpush1.msra.mxu0 %v1481
      %1483 = vmatprep.subr.mxu0 0.0
      %v1484 = vand.u32 %v1213, 4294901760
      %v1485 = vsub.f32 %v1213, %v1484
      %1486 = vmatpush1.msra.mxu0 %v1485
      %1487 = vmatprep.subr.mxu0 0.0
      %v1488 = vand.u32 %v1212, 4294901760
      %v1489 = vsub.f32 %v1212, %v1488
      %1490 = vmatpush1.msra.mxu0 %v1489
      %1491 = vmatprep.subr.mxu0 0.0
      %v1492 = vand.u32 %v1211, 4294901760
      %v1493 = vsub.f32 %v1211, %v1492
      %1494 = vmatpush1.msra.mxu0 %v1493
      %1495 = vmatprep.subr.mxu0 0.0
      %v1496 = vand.u32 %v1210, 4294901760
      %v1497 = vsub.f32 %v1210, %v1496
      %1498 = vmatpush1.msra.mxu0 %v1497
      %1499 = vmatprep.subr.mxu0 0.0
      %v1500 = vand.u32 %v1209, 4294901760
      %v1501 = vsub.f32 %v1209, %v1500
      %1502 = vmatpush1.msra.mxu0 %v1501
      %1503 = vmatprep.subr.mxu0 0.0
      %v1504 = vand.u32 %v1208, 4294901760
      %v1505 = vsub.f32 %v1208, %v1504
      %1506 = vmatpush1.msra.mxu0 %v1505
      %1507 = vmatprep.subr.mxu0 0.0
      %v1508 = vand.u32 %v1207, 4294901760
      %v1509 = vsub.f32 %v1207, %v1508
      %1510 = vmatpush1.msra.mxu0 %v1509
      %1511 = vmatprep.subr.mxu0 0.0
      %v1512 = vand.u32 %v1206, 4294901760
      %v1513 = vsub.f32 %v1206, %v1512
      %1514 = vmatpush1.msra.mxu0 %v1513
      %1515 = vmatprep.subr.mxu0 0.0
      %v1516 = vand.u32 %v1205, 4294901760
      %v1517 = vsub.f32 %v1205, %v1516
      %1518 = vmatpush1.msra.mxu0 %v1517
      %1519 = vmatprep.subr.mxu0 0.0
      %v1520 = vand.u32 %v1204, 4294901760
      %v1521 = vsub.f32 %v1204, %v1520
      %1522 = vmatpush1.msra.mxu0 %v1521
      %1523 = vmatprep.subr.mxu0 0.0
      %v1524 = vand.u32 %v1203, 4294901760
      %v1525 = vsub.f32 %v1203, %v1524
      %1526 = vmatpush1.msra.mxu0 %v1525
      %1527 = vmatprep.subr.mxu0 0.0
      %v1528 = vand.u32 %v1202, 4294901760
      %v1529 = vsub.f32 %v1202, %v1528
      %1530 = vmatpush1.msra.mxu0 %v1529
      %1531 = vmatprep.subr.mxu0 0.0
      %1532 = vmatpush2.msra.mxu0 0.0
      %1533 = vmatprep.subr.mxu0 0.0
      %1534 = vmatpush2.msra.mxu0 0.0
      %1535 = vmatprep.subr.mxu0 0.0
      %1536 = vmatpush2.msra.mxu0 0.0
      %1537 = vmatprep.subr.mxu0 0.0
      %1538 = vmatpush2.msra.mxu0 0.0
      %1539 = vmatprep.subr.mxu0 0.0
      %1540 = vmatpush2.msra.mxu0 0.0
      %1541 = vmatprep.subr.mxu0 0.0
      %1542 = vmatpush2.msra.mxu0 0.0
      %1543 = vmatprep.subr.mxu0 0.0
      %1544 = vmatpush2.msra.mxu0 0.0
      %1545 = vmatprep.subr.mxu0 0.0
      %1546 = vmatpush2.msra.mxu0 0.0
      %1547 = vmatprep.subr.mxu0 0.0
      %1548 = vmatpush2.msra.mxu0 0.0
      %1549 = vmatprep.subr.mxu0 0.0
      %1550 = vmatpush2.msra.mxu0 0.0
      %1551 = vmatprep.subr.mxu0 0.0
      %1552 = vmatpush2.msra.mxu0 0.0
      %1553 = vmatprep.subr.mxu0 0.0
      %1554 = vmatpush2.msra.mxu0 0.0
      %1555 = vmatprep.subr.mxu0 0.0
      %1556 = vmatpush2.msra.mxu0 0.0
      %1557 = vmatprep.subr.mxu0 0.0
      %1558 = vmatpush2.msra.mxu0 0.0
      %1559 = vmatprep.subr.mxu0 0.0
      %1560 = vmatpush2.msra.mxu0 0.0
      %1561 = vmatprep.subr.mxu0 0.0
      %1562 = vmatpush2.msra.mxu0 0.0
      %1563 = vmatprep.mubr.f32.mxu0 0.0
      %v1564 = vand.u32 %v1199, 4294901760
      %v1565 = vsub.f32 %v1199, %v1564
      %1566 = vmatmul.mubr.f32.gmra.mxu0 %v1565
      %v1567 = vpop.f32.mrf.mxu0
      %v1568 = vadd.f32 %v1464, %v1567
      %v1569 = vpop.f32.mrf.mxu0
      %1570 = vdwg.mxu0
      %1571 = vmatprep.subr.mxu0 0.0
      %v1572 = vand.u32 %v1217, 4294901760
      %1573 = vmatpush1.msra.mxu0 %v1572
      %1574 = vmatprep.subr.mxu0 0.0
      %v1575 = vand.u32 %v1216, 4294901760
      %1576 = vmatpush1.msra.mxu0 %v1575
      %1577 = vmatprep.subr.mxu0 0.0
      %v1578 = vand.u32 %v1215, 4294901760
      %1579 = vmatpush1.msra.mxu0 %v1578
      %1580 = vmatprep.subr.mxu0 0.0
      %v1581 = vand.u32 %v1214, 4294901760
      %1582 = vmatpush1.msra.mxu0 %v1581
      %1583 = vmatprep.subr.mxu0 0.0
      %v1584 = vand.u32 %v1213, 4294901760
      %1585 = vmatpush1.msra.mxu0 %v1584
      %1586 = vmatprep.subr.mxu0 0.0
      %v1587 = vand.u32 %v1212, 4294901760
      %1588 = vmatpush1.msra.mxu0 %v1587
      %1589 = vmatprep.subr.mxu0 0.0
      %v1590 = vand.u32 %v1211, 4294901760
      %1591 = vmatpush1.msra.mxu0 %v1590
      %1592 = vmatprep.subr.mxu0 0.0
      %v1593 = vand.u32 %v1210, 4294901760
      %1594 = vmatpush1.msra.mxu0 %v1593
      %1595 = vmatprep.subr.mxu0 0.0
      %v1596 = vand.u32 %v1209, 4294901760
      %1597 = vmatpush1.msra.mxu0 %v1596
      %1598 = vmatprep.subr.mxu0 0.0
      %v1599 = vand.u32 %v1208, 4294901760
      %1600 = vmatpush1.msra.mxu0 %v1599
      %1601 = vmatprep.subr.mxu0 0.0
      %v1602 = vand.u32 %v1207, 4294901760
      %1603 = vmatpush1.msra.mxu0 %v1602
      %1604 = vmatprep.subr.mxu0 0.0
      %v1605 = vand.u32 %v1206, 4294901760
      %1606 = vmatpush1.msra.mxu0 %v1605
      %1607 = vmatprep.subr.mxu0 0.0
      %v1608 = vand.u32 %v1205, 4294901760
      %1609 = vmatpush1.msra.mxu0 %v1608
      %1610 = vmatprep.subr.mxu0 0.0
      %v1611 = vand.u32 %v1204, 4294901760
      %1612 = vmatpush1.msra.mxu0 %v1611
      %1613 = vmatprep.subr.mxu0 0.0
      %v1614 = vand.u32 %v1203, 4294901760
      %1615 = vmatpush1.msra.mxu0 %v1614
      %1616 = vmatprep.subr.mxu0 0.0
      %v1617 = vand.u32 %v1202, 4294901760
      %1618 = vmatpush1.msra.mxu0 %v1617
      %1619 = vmatprep.subr.mxu0 0.0
      %1620 = vmatpush2.msra.mxu0 0.0
      %1621 = vmatprep.subr.mxu0 0.0
      %1622 = vmatpush2.msra.mxu0 0.0
      %1623 = vmatprep.subr.mxu0 0.0
      %1624 = vmatpush2.msra.mxu0 0.0
      %1625 = vmatprep.subr.mxu0 0.0
      %1626 = vmatpush2.msra.mxu0 0.0
      %1627 = vmatprep.subr.mxu0 0.0
      %1628 = vmatpush2.msra.mxu0 0.0
      %1629 = vmatprep.subr.mxu0 0.0
      %1630 = vmatpush2.msra.mxu0 0.0
      %1631 = vmatprep.subr.mxu0 0.0
      %1632 = vmatpush2.msra.mxu0 0.0
      %1633 = vmatprep.subr.mxu0 0.0
      %1634 = vmatpush2.msra.mxu0 0.0
      %1635 = vmatprep.subr.mxu0 0.0
      %1636 = vmatpush2.msra.mxu0 0.0
      %1637 = vmatprep.subr.mxu0 0.0
      %1638 = vmatpush2.msra.mxu0 0.0
      %1639 = vmatprep.subr.mxu0 0.0
      %1640 = vmatpush2.msra.mxu0 0.0
      %1641 = vmatprep.subr.mxu0 0.0
      %1642 = vmatpush2.msra.mxu0 0.0
      %1643 = vmatprep.subr.mxu0 0.0
      %1644 = vmatpush2.msra.mxu0 0.0
      %1645 = vmatprep.subr.mxu0 0.0
      %1646 = vmatpush2.msra.mxu0 0.0
      %1647 = vmatprep.subr.mxu0 0.0
      %1648 = vmatpush2.msra.mxu0 0.0
      %1649 = vmatprep.subr.mxu0 0.0
      %1650 = vmatpush2.msra.mxu0 0.0
      %1651 = vmatprep.mubr.f32.mxu0 0.0
      %v1652 = vand.u32 %v1199, 4294901760
      %v1653 = vsub.f32 %v1199, %v1652
      %v1654 = vand.u32 %v1653, 4294901760
      %1655 = vmatmul.mubr.f32.gmra.mxu0 %v1654
      %v1656 = vpop.f32.mrf.mxu0
      %v1657 = vadd.f32 %v1568, %v1656
      %v1658 = vpop.f32.mrf.mxu0
      %1659 = vdwg.mxu0
      %1660 = vmatprep.subr.mxu0 0.0
      %v1661 = vand.u32 %v1217, 4294901760
      %v1662 = vsub.f32 %v1217, %v1661
      %v1663 = vand.u32 %v1662, 4294901760
      %1664 = vmatpush1.msra.mxu0 %v1663
      %1665 = vmatprep.subr.mxu0 0.0
      %v1666 = vand.u32 %v1216, 4294901760
      %v1667 = vsub.f32 %v1216, %v1666
      %v1668 = vand.u32 %v1667, 4294901760
      %1669 = vmatpush1.msra.mxu0 %v1668
      %1670 = vmatprep.subr.mxu0 0.0
      %v1671 = vand.u32 %v1215, 4294901760
      %v1672 = vsub.f32 %v1215, %v1671
      %v1673 = vand.u32 %v1672, 4294901760
      %1674 = vmatpush1.msra.mxu0 %v1673
      %1675 = vmatprep.subr.mxu0 0.0
      %v1676 = vand.u32 %v1214, 4294901760
      %v1677 = vsub.f32 %v1214, %v1676
      %v1678 = vand.u32 %v1677, 4294901760
      %1679 = vmatpush1.msra.mxu0 %v1678
      %1680 = vmatprep.subr.mxu0 0.0
      %v1681 = vand.u32 %v1213, 4294901760
      %v1682 = vsub.f32 %v1213, %v1681
      %v1683 = vand.u32 %v1682, 4294901760
      %1684 = vmatpush1.msra.mxu0 %v1683
      %1685 = vmatprep.subr.mxu0 0.0
      %v1686 = vand.u32 %v1212, 4294901760
      %v1687 = vsub.f32 %v1212, %v1686
      %v1688 = vand.u32 %v1687, 4294901760
      %1689 = vmatpush1.msra.mxu0 %v1688
      %1690 = vmatprep.subr.mxu0 0.0
      %v1691 = vand.u32 %v1211, 4294901760
      %v1692 = vsub.f32 %v1211, %v1691
      %v1693 = vand.u32 %v1692, 4294901760
      %1694 = vmatpush1.msra.mxu0 %v1693
      %1695 = vmatprep.subr.mxu0 0.0
      %v1696 = vand.u32 %v1210, 4294901760
      %v1697 = vsub.f32 %v1210, %v1696
      %v1698 = vand.u32 %v1697, 4294901760
      %1699 = vmatpush1.msra.mxu0 %v1698
      %1700 = vmatprep.subr.mxu0 0.0
      %v1701 = vand.u32 %v1209, 4294901760
      %v1702 = vsub.f32 %v1209, %v1701
      %v1703 = vand.u32 %v1702, 4294901760
      %1704 = vmatpush1.msra.mxu0 %v1703
      %1705 = vmatprep.subr.mxu0 0.0
      %v1706 = vand.u32 %v1208, 4294901760
      %v1707 = vsub.f32 %v1208, %v1706
      %v1708 = vand.u32 %v1707, 4294901760
      %1709 = vmatpush1.msra.mxu0 %v1708
      %1710 = vmatprep.subr.mxu0 0.0
      %v1711 = vand.u32 %v1207, 4294901760
      %v1712 = vsub.f32 %v1207, %v1711
      %v1713 = vand.u32 %v1712, 4294901760
      %1714 = vmatpush1.msra.mxu0 %v1713
      %1715 = vmatprep.subr.mxu0 0.0
      %v1716 = vand.u32 %v1206, 4294901760
      %v1717 = vsub.f32 %v1206, %v1716
      %v1718 = vand.u32 %v1717, 4294901760
      %1719 = vmatpush1.msra.mxu0 %v1718
      %1720 = vmatprep.subr.mxu0 0.0
      %v1721 = vand.u32 %v1205, 4294901760
      %v1722 = vsub.f32 %v1205, %v1721
      %v1723 = vand.u32 %v1722, 4294901760
      %1724 = vmatpush1.msra.mxu0 %v1723
      %1725 = vmatprep.subr.mxu0 0.0
      %v1726 = vand.u32 %v1204, 4294901760
      %v1727 = vsub.f32 %v1204, %v1726
      %v1728 = vand.u32 %v1727, 4294901760
      %1729 = vmatpush1.msra.mxu0 %v1728
      %1730 = vmatprep.subr.mxu0 0.0
      %v1731 = vand.u32 %v1203, 4294901760
      %v1732 = vsub.f32 %v1203, %v1731
      %v1733 = vand.u32 %v1732, 4294901760
      %1734 = vmatpush1.msra.mxu0 %v1733
      %1735 = vmatprep.subr.mxu0 0.0
      %v1736 = vand.u32 %v1202, 4294901760
      %v1737 = vsub.f32 %v1202, %v1736
      %v1738 = vand.u32 %v1737, 4294901760
      %1739 = vmatpush1.msra.mxu0 %v1738
      %1740 = vmatprep.subr.mxu0 0.0
      %1741 = vmatpush2.msra.mxu0 0.0
      %1742 = vmatprep.subr.mxu0 0.0
      %1743 = vmatpush2.msra.mxu0 0.0
      %1744 = vmatprep.subr.mxu0 0.0
      %1745 = vmatpush2.msra.mxu0 0.0
      %1746 = vmatprep.subr.mxu0 0.0
      %1747 = vmatpush2.msra.mxu0 0.0
      %1748 = vmatprep.subr.mxu0 0.0
      %1749 = vmatpush2.msra.mxu0 0.0
      %1750 = vmatprep.subr.mxu0 0.0
      %1751 = vmatpush2.msra.mxu0 0.0
      %1752 = vmatprep.subr.mxu0 0.0
      %1753 = vmatpush2.msra.mxu0 0.0
      %1754 = vmatprep.subr.mxu0 0.0
      %1755 = vmatpush2.msra.mxu0 0.0
      %1756 = vmatprep.subr.mxu0 0.0
      %1757 = vmatpush2.msra.mxu0 0.0
      %1758 = vmatprep.subr.mxu0 0.0
      %1759 = vmatpush2.msra.mxu0 0.0
      %1760 = vmatprep.subr.mxu0 0.0
      %1761 = vmatpush2.msra.mxu0 0.0
      %1762 = vmatprep.subr.mxu0 0.0
      %1763 = vmatpush2.msra.mxu0 0.0
      %1764 = vmatprep.subr.mxu0 0.0
      %1765 = vmatpush2.msra.mxu0 0.0
      %1766 = vmatprep.subr.mxu0 0.0
      %1767 = vmatpush2.msra.mxu0 0.0
      %1768 = vmatprep.subr.mxu0 0.0
      %1769 = vmatpush2.msra.mxu0 0.0
      %1770 = vmatprep.subr.mxu0 0.0
      %1771 = vmatpush2.msra.mxu0 0.0
      %1772 = vmatprep.mubr.f32.mxu0 0.0
      %v1773 = vand.u32 %v1199, 4294901760
      %1774 = vmatmul.mubr.f32.gmra.mxu0 %v1773
      %v1775 = vpop.f32.mrf.mxu0
      %v1776 = vadd.f32 %v1657, %v1775
      %v1777 = vpop.f32.mrf.mxu0
      %1778 = vdwg.mxu0
      %1779 = vmatprep.subr.mxu0 0.0
      %v1780 = vand.u32 %v1217, 4294901760
      %1781 = vmatpush1.msra.mxu0 %v1780
      %1782 = vmatprep.subr.mxu0 0.0
      %v1783 = vand.u32 %v1216, 4294901760
      %1784 = vmatpush1.msra.mxu0 %v1783
      %1785 = vmatprep.subr.mxu0 0.0
      %v1786 = vand.u32 %v1215, 4294901760
      %1787 = vmatpush1.msra.mxu0 %v1786
      %1788 = vmatprep.subr.mxu0 0.0
      %v1789 = vand.u32 %v1214, 4294901760
      %1790 = vmatpush1.msra.mxu0 %v1789
      %1791 = vmatprep.subr.mxu0 0.0
      %v1792 = vand.u32 %v1213, 4294901760
      %1793 = vmatpush1.msra.mxu0 %v1792
      %1794 = vmatprep.subr.mxu0 0.0
      %v1795 = vand.u32 %v1212, 4294901760
      %1796 = vmatpush1.msra.mxu0 %v1795
      %1797 = vmatprep.subr.mxu0 0.0
      %v1798 = vand.u32 %v1211, 4294901760
      %1799 = vmatpush1.msra.mxu0 %v1798
      %1800 = vmatprep.subr.mxu0 0.0
      %v1801 = vand.u32 %v1210, 4294901760
      %1802 = vmatpush1.msra.mxu0 %v1801
      %1803 = vmatprep.subr.mxu0 0.0
      %v1804 = vand.u32 %v1209, 4294901760
      %1805 = vmatpush1.msra.mxu0 %v1804
      %1806 = vmatprep.subr.mxu0 0.0
      %v1807 = vand.u32 %v1208, 4294901760
      %1808 = vmatpush1.msra.mxu0 %v1807
      %1809 = vmatprep.subr.mxu0 0.0
      %v1810 = vand.u32 %v1207, 4294901760
      %1811 = vmatpush1.msra.mxu0 %v1810
      %1812 = vmatprep.subr.mxu0 0.0
      %v1813 = vand.u32 %v1206, 4294901760
      %1814 = vmatpush1.msra.mxu0 %v1813
      %1815 = vmatprep.subr.mxu0 0.0
      %v1816 = vand.u32 %v1205, 4294901760
      %1817 = vmatpush1.msra.mxu0 %v1816
      %1818 = vmatprep.subr.mxu0 0.0
      %v1819 = vand.u32 %v1204, 4294901760
      %1820 = vmatpush1.msra.mxu0 %v1819
      %1821 = vmatprep.subr.mxu0 0.0
      %v1822 = vand.u32 %v1203, 4294901760
      %1823 = vmatpush1.msra.mxu0 %v1822
      %1824 = vmatprep.subr.mxu0 0.0
      %v1825 = vand.u32 %v1202, 4294901760
      %1826 = vmatpush1.msra.mxu0 %v1825
      %1827 = vmatprep.subr.mxu0 0.0
      %1828 = vmatpush2.msra.mxu0 0.0
      %1829 = vmatprep.subr.mxu0 0.0
      %1830 = vmatpush2.msra.mxu0 0.0
      %1831 = vmatprep.subr.mxu0 0.0
      %1832 = vmatpush2.msra.mxu0 0.0
      %1833 = vmatprep.subr.mxu0 0.0
      %1834 = vmatpush2.msra.mxu0 0.0
      %1835 = vmatprep.subr.mxu0 0.0
      %1836 = vmatpush2.msra.mxu0 0.0
      %1837 = vmatprep.subr.mxu0 0.0
      %1838 = vmatpush2.msra.mxu0 0.0
      %1839 = vmatprep.subr.mxu0 0.0
      %1840 = vmatpush2.msra.mxu0 0.0
      %1841 = vmatprep.subr.mxu0 0.0
      %1842 = vmatpush2.msra.mxu0 0.0
      %1843 = vmatprep.subr.mxu0 0.0
      %1844 = vmatpush2.msra.mxu0 0.0
      %1845 = vmatprep.subr.mxu0 0.0
      %1846 = vmatpush2.msra.mxu0 0.0
      %1847 = vmatprep.subr.mxu0 0.0
      %1848 = vmatpush2.msra.mxu0 0.0
      %1849 = vmatprep.subr.mxu0 0.0
      %1850 = vmatpush2.msra.mxu0 0.0
      %1851 = vmatprep.subr.mxu0 0.0
      %1852 = vmatpush2.msra.mxu0 0.0
      %1853 = vmatprep.subr.mxu0 0.0
      %1854 = vmatpush2.msra.mxu0 0.0
      %1855 = vmatprep.subr.mxu0 0.0
      %1856 = vmatpush2.msra.mxu0 0.0
      %1857 = vmatprep.subr.mxu0 0.0
      %1858 = vmatpush2.msra.mxu0 0.0
      %1859 = vmatprep.mubr.f32.mxu0 0.0
      %v1860 = vand.u32 %v1199, 4294901760
      %1861 = vmatmul.mubr.f32.gmra.mxu0 %v1860
      %v1862 = vpop.f32.mrf.mxu0
      %v1863 = vadd.f32 %v1776, %v1862
      %v1864 = vpop.f32.mrf.mxu0
      %1865 = vdwg.mxu0
      %v1866 = vlaneseq
      %v1867 = vand.u32 %v1866, 127
      %vm1868 = vcmp.lt.s32.totalorder %v1867, 10
      %v1869 = vsel %vm1868, %v1863, -1e+30
      %1870 = vmax.xlane.f32.xlu0 %v1869
      %v1871 = vpop.xlane.xlu0 %1870
      %v1872 = vsub.f32 %v1869, %v1871
      %v1873 = vmul.f32 %v1872, 1.442695
      %v1874 = vpow.pop %v1873
      %1875 = vadd.xlane.f32.xlu0 %v1874
      %v1876 = vpop.xlane.xlu0 %1875
      %v1877 = vrcp.pop %v1876
      %v1878 = vmul.f32 %v1874, %v1877
      %1879 = vst [vmem:[%s280] sm:$0xff] %v1878
      %p1880 = scmp.lt.s32.totalorder %s19, 7
      %s1881 = scalar_select %p1880, %s19, 7
      %s1882 = smul.addr %s1881, 8
      %s1883 = scalar_lea.vmem %s6, %s1882
      %p1884 = scmp.lt.s32.totalorder %s19, 7
      %s1885 = scalar_select %p1884, %s19, 7
      %s1886 = smul.addr %s1885, 8
      %s1887 = scalar_lea.vmem %s7, %s1886
      // Predicated region
      $region49: #{esn_forward_seq.1} parent=43 // pred_check
        %p1888 = pneg %p168
      $region50: #{esn_forward_seq.1} parent=43 // pred_check_branch
        %1890 = sbr.rel (%p1888) target = $region52
      $region51: #{esn_forward_seq.1} parent=43 // pred_region
        _
      $region52: #{esn_forward_seq.1} parent=43 // pred_fallthru
        _
      // Predicated region
      $region53: #{esn_forward_seq.1} parent=43 // pred_check
        %p1891 = pneg %p194
      $region54: #{esn_forward_seq.1} parent=43 // pred_check_branch
        %1893 = sbr.rel (%p1891) target = $region56
      $region55: #{esn_forward_seq.1} parent=43 // pred_region
        _
      $region56: #{esn_forward_seq.1} parent=43 // pred_fallthru
        _
    $region44: #{esn_forward_seq.1} parent=5 // pred_fallthru
      _
    %p1894 = scmp.le.s32.totalorder 2, %s14
    // Predicated region
    $region57: #{esn_forward_seq.1} parent=5 // pred_check
      %p1895 = pneg %p1894
    $region58: #{esn_forward_seq.1} parent=5 // pred_check_branch
      %1897 = sbr.rel (%p1895) target = $region60
    $region59: #{esn_forward_seq.1} parent=5 // pred_region
      %s1898 = ssub.s32 %s14, 2
      // Predicated region
      $region61: #{esn_forward_seq.1} parent=59 // pred_check
        %p1899 = pneg %p174
      $region62: #{esn_forward_seq.1} parent=59 // pred_check_branch
        %1901 = sbr.rel (%p1899) target = $region64
      $region63: #{esn_forward_seq.1} parent=59 // pred_region
        %p1902 = scmp.lt.s32.totalorder %s20, 7
        %s1903 = scalar_select %p1902, %s20, 7
        %s1904 = smul.addr %s1903, 8
        %s1905 = scalar_lea.vmem %s6, %s1904
      $region64: #{esn_forward_seq.1} parent=59 // pred_fallthru
        _
      // Predicated region
      $region65: #{esn_forward_seq.1} parent=59 // pred_check
        %p1906 = pneg %p200
      $region66: #{esn_forward_seq.1} parent=59 // pred_check_branch
        %1908 = sbr.rel (%p1906) target = $region68
      $region67: #{esn_forward_seq.1} parent=59 // pred_region
        %p1909 = scmp.lt.s32.totalorder %s20, 7
        %s1910 = scalar_select %p1909, %s20, 7
        %s1911 = smul.addr %s1910, 8
        %s1912 = scalar_lea.vmem %s7, %s1911
      $region68: #{esn_forward_seq.1} parent=59 // pred_fallthru
        _
    $region60: #{esn_forward_seq.1} parent=5 // pred_fallthru
      _
  $region6: #{esn_forward_seq.1} parent=0 // loop_footer
    %s18 = sadd.s32 1, %s14
  $region7: #{esn_forward_seq.1} parent=0 // loop_footer_branch
    %13 = sbr.rel target = $region3
  $region8: #{esn_forward_seq.1} parent=0 // loop_exit
    _

</llo_original>
